<compile_context>
chip_gen: v6e
topology: v6e:2x2x1
jax: 0.10.0
libtpu: 0.0.40
codegen_flags: <defaults>
</compile_context>

<pallas_src>
import functools

import jax
import jax.numpy as jnp
from jax import lax
from jax.experimental import pallas as pl
from jax.experimental.pallas import tpu as pltpu

LN_EPS = 1e-5  # PyTorch nn.LayerNorm default eps

# Parameter order as passed to the kernel (after wrapper-side QKV fusion).
PARAM_ORDER = [
    "ln1_g", "ln1_b",
    "wqkv", "bqkv", "wo", "bo",
    "ln2_g", "ln2_b",
    "w1", "b1", "w2", "b2",
]


def _layernorm(x, g, b):
    mu = jnp.mean(x, axis=-1, keepdims=True)
    var = jnp.mean((x - mu) ** 2, axis=-1, keepdims=True)
    return (x - mu) * lax.rsqrt(var + LN_EPS) * g + b


def _fused_kernel(heads, dim_head, n_layers,
                  x_ref,
                  ln1_g, ln1_b, wqkv, bqkv, wo, bo,
                  ln2_g, ln2_b, w1, b1, w2, b2,
                  out_ref):
    """All layers for one batch tile; layers iterated with an in-kernel loop."""
    Bb, N, D = x_ref.shape
    H, Dh = heads, dim_head
    inner = H * Dh
    M = Bb * N

    def layer(l, x):                                        # x: (M, D) f32
        # ----------------- PreNorm + multi-head self-attention ---------------
        xn = _layernorm(x, ln1_g[l], ln1_b[l])
        # One fused QKV matmul: bf16 operands, f32 accumulation on the MXU.
        qkv = jnp.dot(xn.astype(jnp.bfloat16), wqkv[l],
                      preferred_element_type=jnp.float32) + bqkv[l]  # (M, 3*inner)

        o_heads = []
        for h in range(H):                                  # static unroll
            # Static lane slices (no minor-dim split reshape / relayout).
            qh = qkv[:, h * Dh:(h + 1) * Dh]
            kh = qkv[:, inner + h * Dh:inner + (h + 1) * Dh]
            vh = qkv[:, 2 * inner + h * Dh:2 * inner + (h + 1) * Dh]
            qh = qh.reshape(Bb, N, Dh).astype(jnp.bfloat16)  # major-dim reshape
            kh = kh.reshape(Bb, N, Dh).astype(jnp.bfloat16)
            vh = vh.reshape(Bb, N, Dh).astype(jnp.bfloat16)

            # Attention scale already folded into wq/bq in the wrapper.
            s = jnp.einsum("bnd,bmd->bnm", qh, kh,
                           preferred_element_type=jnp.float32)  # (Bb,N,N) f32
            s = s - jnp.max(s, axis=-1, keepdims=True)
            e = jnp.exp(s)
            inv = pl.reciprocal(jnp.sum(e, axis=-1, keepdims=True), approx=True)
            p = (e * inv).astype(jnp.bfloat16)
            oh = jnp.einsum("bnm,bmd->bnd", p, vh,
                            preferred_element_type=jnp.float32)  # (Bb,N,Dh) f32
            o_heads.append(oh.reshape(M, Dh))

        o = jnp.concatenate(o_heads, axis=-1).astype(jnp.bfloat16)  # (M, inner)
        attn = jnp.dot(o, wo[l], preferred_element_type=jnp.float32) + bo[l]
        x = x + attn                                         # residual 1 (f32)

        # ---------------------- PreNorm + FeedForward ------------------------
        xn2 = _layernorm(x, ln2_g[l], ln2_b[l])
        h1 = jnp.dot(xn2.astype(jnp.bfloat16), w1[l],
                     preferred_element_type=jnp.float32) + b1[l]
        # TODO(synk): PyTorch nn.GELU default is exact (erf); tanh approximation
        # is used here (matches the reference below, |diff| vs erf ~1e-3).
        h1 = jax.nn.gelu(h1, approximate=True)               # f32 elementwise
        ff = jnp.dot(h1.astype(jnp.bfloat16), w2[l],
                     preferred_element_type=jnp.float32) + b2[l]
        return x + ff                                        # residual 2 (f32)

    x0 = x_ref[...].reshape(M, D)                            # 2-D matmul LHS
    x_out = lax.fori_loop(0, n_layers, layer, x0, unroll=True)
    # TODO(synk): out last dim D=32 (<128) -> masked stores; one store per batch
    # tile, negligible at these shapes.
    out_ref[...] = x_out.reshape(Bb, N, D).astype(out_ref.dtype)


def naive_transformer(x, layer_params, heads, dim_head, *, b_block=None):
    """Runs all (depth-1) transformer layers in a single fused pallas_call."""
    B, N, D = x.shape
    L = len(layer_params)
    if L == 0:
        return x
    if b_block is None:
        # >=2 batch tiles when possible so the "parallel" axis can shard across
        # both TensorCores on v7x (harmless single extra step on v5e/v6e).
        b_block = B // 2 if (B >= 2 and B % 2 == 0) else B
    assert B % b_block == 0

    att_scale = dim_head ** -0.5

    # Per-layer param transform (one-time, outside the kernel):
    #  * fold attention scale into wq/bq,
    #  * fuse wq/wk/wv -> wqkv and bq/bk/bv -> bqkv,
    #  * pre-cast weight matrices to bf16 (halves their DMA bytes).
    per_layer = []
    for p in layer_params:
        wqkv = jnp.concatenate([p["wq"] * att_scale, p["wk"], p["wv"]], axis=1)
        bqkv = jnp.concatenate([p["bq"] * att_scale, p["bk"], p["bv"]], axis=1)
        per_layer.append(dict(
            ln1_g=p["ln1_g"], ln1_b=p["ln1_b"],
            wqkv=wqkv.astype(jnp.bfloat16), bqkv=bqkv,
            wo=p["wo"].astype(jnp.bfloat16), bo=p["bo"],
            ln2_g=p["ln2_g"], ln2_b=p["ln2_b"],
            w1=p["w1"].astype(jnp.bfloat16), b1=p["b1"],
            w2=p["w2"].astype(jnp.bfloat16), b2=p["b2"],
        ))
    stacked = {name: jnp.stack([lp[name] for lp in per_layer])
               for name in PARAM_ORDER}
    plist = [stacked[name] for name in PARAM_ORDER]

    # x / out tiled over batch; all stacked weights passed as whole blocks
    # (same block index every grid step -> DMA'd once, VMEM-resident).
    in_specs = [pl.BlockSpec((b_block, N, D), lambda b: (b, 0, 0))]
    for p in plist:
        nd = p.ndim
        in_specs.append(pl.BlockSpec(p.shape, lambda b, _nd=nd: (0,) * _nd))

    kernel = functools.partial(_fused_kernel, heads, dim_head, L)
    return pl.pallas_call(
        kernel,
        out_shape=jax.ShapeDtypeStruct((B, N, D), x.dtype),
        grid=(B // b_block,),
        in_specs=in_specs,
        out_specs=pl.BlockSpec((b_block, N, D), lambda b: (b, 0, 0)),
        compiler_params=pltpu.CompilerParams(
            dimension_semantics=("parallel",),
            # Explicit VMEM budget (safe on v5e/v6e/v7x at these shapes); at
            # real CvT token counts re-derive against v7x's 64 MiB physical.
            vmem_limit_bytes=32 * 1024 * 1024),
    )(x, *plist)


# ----------------------------- parameter init -------------------------------
def init_layer_params(key, dim, heads, dim_head, scale):
    inner = heads * dim_head
    hidden = dim * scale
    ks = jax.random.split(key, 10)
    n = lambda k, s: (0.02 * jax.random.normal(k, s)).astype(jnp.float32)
    return dict(
        ln1_g=jnp.ones((1, dim), jnp.float32),
        ln1_b=jnp.zeros((1, dim), jnp.float32),
        wq=n(ks[0], (dim, inner)), bq=n(ks[1], (1, inner)),
        wk=n(ks[2], (dim, inner)), bk=n(ks[3], (1, inner)),
        wv=n(ks[4], (dim, inner)), bv=n(ks[5], (1, inner)),
        wo=n(ks[6], (inner, dim)), bo=n(ks[7], (1, dim)),
        ln2_g=jnp.ones((1, dim), jnp.float32),
        ln2_b=jnp.zeros((1, dim), jnp.float32),
        w1=n(ks[8], (dim, hidden)), b1=jnp.zeros((1, hidden), jnp.float32),
        w2=n(ks[9], (hidden, dim)), b2=jnp.zeros((1, dim), jnp.float32),
    )


# --------------------------- pure-JAX reference -----------------------------
def _layer_ref(x, p, heads, dim_head):
    def ln(y, g, b):
        mu = jnp.mean(y, -1, keepdims=True)
        var = jnp.mean((y - mu) ** 2, -1, keepdims=True)
        return (y - mu) / jnp.sqrt(var + LN_EPS) * g + b

    B, N, D = x.shape
    xn = ln(x, p["ln1_g"], p["ln1_b"])
    q = (xn @ p["wq"] + p["bq"]).reshape(B, N, heads, dim_head)
    k = (xn @ p["wk"] + p["bk"]).reshape(B, N, heads, dim_head)
    v = (xn @ p["wv"] + p["bv"]).reshape(B, N, heads, dim_head)
    s = jnp.einsum("bnhd,bmhd->bhnm", q, k) * dim_head ** -0.5
    a = jax.nn.softmax(s, axis=-1)
    o = jnp.einsum("bhnm,bmhd->bnhd", a, v).reshape(B, N, heads * dim_head)
    x = x + (o @ p["wo"] + p["bo"])
    xn2 = ln(x, p["ln2_g"], p["ln2_b"])
    ff = jax.nn.gelu(xn2 @ p["w1"] + p["b1"], approximate=True) @ p["w2"] + p["b2"]
    return x + ff


def reference(x, layer_params, heads, dim_head):
    for p in layer_params:
        x = _layer_ref(x, p, heads, dim_head)
    return x


# --------------------------------- main --------------------------------------
if __name__ == "__main__":
    # Small shapes consistent with the module's forward (token layout).
    B, N, dim = 2, 8, 32
    heads, dim_head, scale, depth = 2, 16, 2, 3   # depth-1 = 2 layers

    key = jax.random.PRNGKey(0)
    kx, kp = jax.random.split(key)
    x = jax.random.normal(kx, (B, N, dim), dtype=jnp.float32)

    layer_keys = jax.random.split(kp, depth - 1)
    layer_params = [init_layer_params(k, dim, heads, dim_head, scale)
                    for k in layer_keys]

    out = naive_transformer(x, layer_params, heads, dim_head)
    out = jax.block_until_ready(out)

    ref = reference(x, layer_params, heads, dim_head)   # f32 reference
    max_err = float(jnp.max(jnp.abs(out - ref)))
    assert out.shape == (B, N, dim)
    # bf16 matmul operands + approximate reciprocal in the kernel (f32 ref).
    assert max_err < 2e-2, f"mismatch vs reference: {max_err}"

    print("KERNEL_OK")
</pallas_src>

<mosaic_0001>
module attributes {stable_mosaic.version = 11 : i64} {
  func.func @_fused_kernel(%arg0: i32, %arg1: memref<1x8x32xf32, #tpu.memory_space<vmem>>, %arg2: memref<2x1x32xf32, #tpu.memory_space<vmem>>, %arg3: memref<2x1x32xf32, #tpu.memory_space<vmem>>, %arg4: memref<2x32x96xbf16, #tpu.memory_space<vmem>>, %arg5: memref<2x1x96xf32, #tpu.memory_space<vmem>>, %arg6: memref<2x32x32xbf16, #tpu.memory_space<vmem>>, %arg7: memref<2x1x32xf32, #tpu.memory_space<vmem>>, %arg8: memref<2x1x32xf32, #tpu.memory_space<vmem>>, %arg9: memref<2x1x32xf32, #tpu.memory_space<vmem>>, %arg10: memref<2x32x64xbf16, #tpu.memory_space<vmem>>, %arg11: memref<2x1x64xf32, #tpu.memory_space<vmem>>, %arg12: memref<2x64x32xbf16, #tpu.memory_space<vmem>>, %arg13: memref<2x1x32xf32, #tpu.memory_space<vmem>>, %arg14: memref<1x8x32xf32, #tpu.memory_space<vmem>>) attributes {dimension_semantics = [#tpu.dimension_semantics<parallel>], iteration_bounds = array<i64: 2>, scalar_prefetch = 0 : i64, scratch_operands = 0 : i64, tpu.core_type = #tpu.core_type<tc>, window_params = [{transform_indices = @transform_0, window_bounds = array<i64: 1, 8, 32>}, {pipeline_mode = #tpu.pipeline_mode<synchronous>, transform_indices = @transform_1, window_bounds = array<i64: 2, 1, 32>}, {pipeline_mode = #tpu.pipeline_mode<synchronous>, transform_indices = @transform_2, window_bounds = array<i64: 2, 1, 32>}, {pipeline_mode = #tpu.pipeline_mode<synchronous>, transform_indices = @transform_3, window_bounds = array<i64: 2, 32, 96>}, {pipeline_mode = #tpu.pipeline_mode<synchronous>, transform_indices = @transform_4, window_bounds = array<i64: 2, 1, 96>}, {pipeline_mode = #tpu.pipeline_mode<synchronous>, transform_indices = @transform_5, window_bounds = array<i64: 2, 32, 32>}, {pipeline_mode = #tpu.pipeline_mode<synchronous>, transform_indices = @transform_6, window_bounds = array<i64: 2, 1, 32>}, {pipeline_mode = #tpu.pipeline_mode<synchronous>, transform_indices = @transform_7, window_bounds = array<i64: 2, 1, 32>}, {pipeline_mode = #tpu.pipeline_mode<synchronous>, transform_indices = @transform_8, window_bounds = array<i64: 2, 1, 32>}, {pipeline_mode = #tpu.pipeline_mode<synchronous>, transform_indices = @transform_9, window_bounds = array<i64: 2, 32, 64>}, {pipeline_mode = #tpu.pipeline_mode<synchronous>, transform_indices = @transform_10, window_bounds = array<i64: 2, 1, 64>}, {pipeline_mode = #tpu.pipeline_mode<synchronous>, transform_indices = @transform_11, window_bounds = array<i64: 2, 64, 32>}, {pipeline_mode = #tpu.pipeline_mode<synchronous>, transform_indices = @transform_12, window_bounds = array<i64: 2, 1, 32>}, {transform_indices = @transform_13, window_bounds = array<i64: 1, 8, 32>}]} {
    %c0 = arith.constant 0 : index
    %c0_0 = arith.constant 0 : index
    %c0_1 = arith.constant 0 : index
    %0 = vector.load %arg1[%c0, %c0_0, %c0_1] : memref<1x8x32xf32, #tpu.memory_space<vmem>>, vector<1x8x32xf32>
    %1 = vector.shape_cast %0 : vector<1x8x32xf32> to vector<8x32xf32>
    %c0_i32 = arith.constant 0 : i32
    %2 = arith.index_cast %c0_i32 : i32 to index
    %c0_2 = arith.constant 0 : index
    %c0_3 = arith.constant 0 : index
    %3 = vector.load %arg2[%2, %c0_2, %c0_3] : memref<2x1x32xf32, #tpu.memory_space<vmem>>, vector<1x1x32xf32>
    %4 = vector.shape_cast %3 : vector<1x1x32xf32> to vector<1x32xf32>
    %5 = arith.index_cast %c0_i32 : i32 to index
    %c0_4 = arith.constant 0 : index
    %c0_5 = arith.constant 0 : index
    %6 = vector.load %arg3[%5, %c0_4, %c0_5] : memref<2x1x32xf32, #tpu.memory_space<vmem>>, vector<1x1x32xf32>
    %7 = vector.shape_cast %6 : vector<1x1x32xf32> to vector<1x32xf32>
    %cst = arith.constant dense<0.000000e+00> : vector<8xf32>
    %8 = vector.multi_reduction <add>, %1, %cst [1] : vector<8x32xf32> to vector<8xf32>
    %9 = vector.shape_cast %8 : vector<8xf32> to vector<8x1xf32>
    %cst_6 = arith.constant 3.200000e+01 : f32
    %10 = vector.broadcast %cst_6 : f32 to vector<8x1xf32>
    %11 = arith.divf %9, %10 : vector<8x1xf32>
    %12 = vector.broadcast %11 : vector<8x1xf32> to vector<8x32xf32>
    %13 = arith.subf %1, %12 : vector<8x32xf32>
    %14 = arith.mulf %13, %13 : vector<8x32xf32>
    %cst_7 = arith.constant dense<0.000000e+00> : vector<8xf32>
    %15 = vector.multi_reduction <add>, %14, %cst_7 [1] : vector<8x32xf32> to vector<8xf32>
    %16 = vector.shape_cast %15 : vector<8xf32> to vector<8x1xf32>
    %cst_8 = arith.constant 3.200000e+01 : f32
    %17 = vector.broadcast %cst_8 : f32 to vector<8x1xf32>
    %18 = arith.divf %16, %17 : vector<8x1xf32>
    %19 = vector.broadcast %11 : vector<8x1xf32> to vector<8x32xf32>
    %20 = arith.subf %1, %19 : vector<8x32xf32>
    %cst_9 = arith.constant 9.99999974E-6 : f32
    %21 = vector.broadcast %cst_9 : f32 to vector<8x1xf32>
    %22 = arith.addf %18, %21 : vector<8x1xf32>
    %23 = math.rsqrt %22 : vector<8x1xf32>
    %24 = vector.broadcast %23 : vector<8x1xf32> to vector<8x32xf32>
    %25 = arith.mulf %20, %24 : vector<8x32xf32>
    %26 = vector.broadcast %4 : vector<1x32xf32> to vector<8x32xf32>
    %27 = arith.mulf %25, %26 : vector<8x32xf32>
    %28 = vector.broadcast %7 : vector<1x32xf32> to vector<8x32xf32>
    %29 = arith.addf %27, %28 : vector<8x32xf32>
    %30 = arith.truncf %29 : vector<8x32xf32> to vector<8x32xbf16>
    %31 = arith.index_cast %c0_i32 : i32 to index
    %c0_10 = arith.constant 0 : index
    %c0_11 = arith.constant 0 : index
    %32 = vector.load %arg4[%31, %c0_10, %c0_11] : memref<2x32x96xbf16, #tpu.memory_space<vmem>>, vector<1x32x96xbf16>
    %33 = vector.shape_cast %32 : vector<1x32x96xbf16> to vector<32x96xbf16>
    %cst_12 = arith.constant dense<0.000000e+00> : vector<8x96xf32>
    %34 = tpu.matmul %30, %33, %cst_12 {dimension_numbers = #tpu.dot_dimension_numbers<[1], [0], [0], [1], [0, 0, 1, 1], [], []>} : vector<8x32xbf16>, vector<32x96xbf16>, vector<8x96xf32> -> vector<8x96xf32>
    %35 = arith.index_cast %c0_i32 : i32 to index
    %c0_13 = arith.constant 0 : index
    %c0_14 = arith.constant 0 : index
    %36 = vector.load %arg5[%35, %c0_13, %c0_14] : memref<2x1x96xf32, #tpu.memory_space<vmem>>, vector<1x1x96xf32>
    %37 = vector.shape_cast %36 : vector<1x1x96xf32> to vector<1x96xf32>
    %38 = vector.broadcast %37 : vector<1x96xf32> to vector<8x96xf32>
    %39 = arith.addf %34, %38 : vector<8x96xf32>
    %40 = vector.extract_strided_slice %39 {offsets = [0, 0], sizes = [8, 16], strides = [1, 1]} : vector<8x96xf32> to vector<8x16xf32>
    %41 = vector.extract_strided_slice %39 {offsets = [0, 32], sizes = [8, 16], strides = [1, 1]} : vector<8x96xf32> to vector<8x16xf32>
    %42 = vector.extract_strided_slice %39 {offsets = [0, 64], sizes = [8, 16], strides = [1, 1]} : vector<8x96xf32> to vector<8x16xf32>
    %43 = vector.shape_cast %40 : vector<8x16xf32> to vector<1x8x16xf32>
    %44 = arith.truncf %43 : vector<1x8x16xf32> to vector<1x8x16xbf16>
    %45 = vector.shape_cast %41 : vector<8x16xf32> to vector<1x8x16xf32>
    %46 = arith.truncf %45 : vector<1x8x16xf32> to vector<1x8x16xbf16>
    %47 = vector.shape_cast %42 : vector<8x16xf32> to vector<1x8x16xf32>
    %48 = arith.truncf %47 : vector<1x8x16xf32> to vector<1x8x16xbf16>
    "tpu.trace_start"() <{level = 10 : i32, message = "bnd,bmd->bnm"}> : () -> ()
    %cst_15 = arith.constant dense<0.000000e+00> : vector<1x8x8xf32>
    %49 = tpu.matmul %44, %46, %cst_15 {dimension_numbers = #tpu.dot_dimension_numbers<[2], [2], [1], [1], [0, 0, 0, 1, 1, 1], [0], [0]>} : vector<1x8x16xbf16>, vector<1x8x16xbf16>, vector<1x8x8xf32> -> vector<1x8x8xf32>
    "tpu.trace_stop"() : () -> ()
    %cst_16 = arith.constant dense<0xFF800000> : vector<1x8xf32>
    %50 = vector.multi_reduction <maximumf>, %49, %cst_16 [2] : vector<1x8x8xf32> to vector<1x8xf32>
    %51 = vector.shape_cast %50 : vector<1x8xf32> to vector<1x8x1xf32>
    %52 = vector.broadcast %51 : vector<1x8x1xf32> to vector<1x8x8xf32>
    %53 = arith.subf %49, %52 : vector<1x8x8xf32>
    %54 = math.exp %53 : vector<1x8x8xf32>
    %cst_17 = arith.constant dense<0.000000e+00> : vector<1x8xf32>
    %55 = vector.multi_reduction <add>, %54, %cst_17 [2] : vector<1x8x8xf32> to vector<1x8xf32>
    %56 = vector.shape_cast %55 : vector<1x8xf32> to vector<1x8x1xf32>
    %57 = tpu.reciprocal %56 {approx = true} : vector<1x8x1xf32> -> vector<1x8x1xf32>
    %58 = vector.broadcast %57 : vector<1x8x1xf32> to vector<1x8x8xf32>
    %59 = arith.mulf %54, %58 : vector<1x8x8xf32>
    %60 = arith.truncf %59 : vector<1x8x8xf32> to vector<1x8x8xbf16>
    "tpu.trace_start"() <{level = 10 : i32, message = "bnm,bmd->bnd"}> : () -> ()
    %cst_18 = arith.constant dense<0.000000e+00> : vector<1x8x16xf32>
    %61 = tpu.matmul %60, %48, %cst_18 {dimension_numbers = #tpu.dot_dimension_numbers<[2], [1], [1], [2], [0, 0, 0, 1, 1, 2], [0], [0]>} : vector<1x8x8xbf16>, vector<1x8x16xbf16>, vector<1x8x16xf32> -> vector<1x8x16xf32>
    "tpu.trace_stop"() : () -> ()
    %62 = vector.shape_cast %61 : vector<1x8x16xf32> to vector<8x16xf32>
    %63 = vector.extract_strided_slice %39 {offsets = [0, 16], sizes = [8, 16], strides = [1, 1]} : vector<8x96xf32> to vector<8x16xf32>
    %64 = vector.extract_strided_slice %39 {offsets = [0, 48], sizes = [8, 16], strides = [1, 1]} : vector<8x96xf32> to vector<8x16xf32>
    %65 = vector.extract_strided_slice %39 {offsets = [0, 80], sizes = [8, 16], strides = [1, 1]} : vector<8x96xf32> to vector<8x16xf32>
    %66 = vector.shape_cast %63 : vector<8x16xf32> to vector<1x8x16xf32>
    %67 = arith.truncf %66 : vector<1x8x16xf32> to vector<1x8x16xbf16>
    %68 = vector.shape_cast %64 : vector<8x16xf32> to vector<1x8x16xf32>
    %69 = arith.truncf %68 : vector<1x8x16xf32> to vector<1x8x16xbf16>
    %70 = vector.shape_cast %65 : vector<8x16xf32> to vector<1x8x16xf32>
    %71 = arith.truncf %70 : vector<1x8x16xf32> to vector<1x8x16xbf16>
    "tpu.trace_start"() <{level = 10 : i32, message = "bnd,bmd->bnm"}> : () -> ()
    %cst_19 = arith.constant dense<0.000000e+00> : vector<1x8x8xf32>
    %72 = tpu.matmul %67, %69, %cst_19 {dimension_numbers = #tpu.dot_dimension_numbers<[2], [2], [1], [1], [0, 0, 0, 1, 1, 1], [0], [0]>} : vector<1x8x16xbf16>, vector<1x8x16xbf16>, vector<1x8x8xf32> -> vector<1x8x8xf32>
    "tpu.trace_stop"() : () -> ()
    %cst_20 = arith.constant dense<0xFF800000> : vector<1x8xf32>
    %73 = vector.multi_reduction <maximumf>, %72, %cst_20 [2] : vector<1x8x8xf32> to vector<1x8xf32>
    %74 = vector.shape_cast %73 : vector<1x8xf32> to vector<1x8x1xf32>
    %75 = vector.broadcast %74 : vector<1x8x1xf32> to vector<1x8x8xf32>
    %76 = arith.subf %72, %75 : vector<1x8x8xf32>
    %77 = math.exp %76 : vector<1x8x8xf32>
    %cst_21 = arith.constant dense<0.000000e+00> : vector<1x8xf32>
    %78 = vector.multi_reduction <add>, %77, %cst_21 [2] : vector<1x8x8xf32> to vector<1x8xf32>
    %79 = vector.shape_cast %78 : vector<1x8xf32> to vector<1x8x1xf32>
    %80 = tpu.reciprocal %79 {approx = true} : vector<1x8x1xf32> -> vector<1x8x1xf32>
    %81 = vector.broadcast %80 : vector<1x8x1xf32> to vector<1x8x8xf32>
    %82 = arith.mulf %77, %81 : vector<1x8x8xf32>
    %83 = arith.truncf %82 : vector<1x8x8xf32> to vector<1x8x8xbf16>
    "tpu.trace_start"() <{level = 10 : i32, message = "bnm,bmd->bnd"}> : () -> ()
    %cst_22 = arith.constant dense<0.000000e+00> : vector<1x8x16xf32>
    %84 = tpu.matmul %83, %71, %cst_22 {dimension_numbers = #tpu.dot_dimension_numbers<[2], [1], [1], [2], [0, 0, 0, 1, 1, 2], [0], [0]>} : vector<1x8x8xbf16>, vector<1x8x16xbf16>, vector<1x8x16xf32> -> vector<1x8x16xf32>
    "tpu.trace_stop"() : () -> ()
    %85 = vector.shape_cast %84 : vector<1x8x16xf32> to vector<8x16xf32>
    %86 = tpu.concatenate %62, %85 in 1 : vector<8x16xf32>, vector<8x16xf32> -> vector<8x32xf32>
    %87 = arith.truncf %86 : vector<8x32xf32> to vector<8x32xbf16>
    %88 = arith.index_cast %c0_i32 : i32 to index
    %c0_23 = arith.constant 0 : index
    %c0_24 = arith.constant 0 : index
    %89 = vector.load %arg6[%88, %c0_23, %c0_24] : memref<2x32x32xbf16, #tpu.memory_space<vmem>>, vector<1x32x32xbf16>
    %90 = vector.shape_cast %89 : vector<1x32x32xbf16> to vector<32x32xbf16>
    %cst_25 = arith.constant dense<0.000000e+00> : vector<8x32xf32>
    %91 = tpu.matmul %87, %90, %cst_25 {dimension_numbers = #tpu.dot_dimension_numbers<[1], [0], [0], [1], [0, 0, 1, 1], [], []>} : vector<8x32xbf16>, vector<32x32xbf16>, vector<8x32xf32> -> vector<8x32xf32>
    %92 = arith.index_cast %c0_i32 : i32 to index
    %c0_26 = arith.constant 0 : index
    %c0_27 = arith.constant 0 : index
    %93 = vector.load %arg7[%92, %c0_26, %c0_27] : memref<2x1x32xf32, #tpu.memory_space<vmem>>, vector<1x1x32xf32>
    %94 = vector.shape_cast %93 : vector<1x1x32xf32> to vector<1x32xf32>
    %95 = vector.broadcast %94 : vector<1x32xf32> to vector<8x32xf32>
    %96 = arith.addf %91, %95 : vector<8x32xf32>
    %97 = arith.addf %1, %96 : vector<8x32xf32>
    %98 = arith.index_cast %c0_i32 : i32 to index
    %c0_28 = arith.constant 0 : index
    %c0_29 = arith.constant 0 : index
    %99 = vector.load %arg8[%98, %c0_28, %c0_29] : memref<2x1x32xf32, #tpu.memory_space<vmem>>, vector<1x1x32xf32>
    %100 = vector.shape_cast %99 : vector<1x1x32xf32> to vector<1x32xf32>
    %101 = arith.index_cast %c0_i32 : i32 to index
    %c0_30 = arith.constant 0 : index
    %c0_31 = arith.constant 0 : index
    %102 = vector.load %arg9[%101, %c0_30, %c0_31] : memref<2x1x32xf32, #tpu.memory_space<vmem>>, vector<1x1x32xf32>
    %103 = vector.shape_cast %102 : vector<1x1x32xf32> to vector<1x32xf32>
    %cst_32 = arith.constant dense<0.000000e+00> : vector<8xf32>
    %104 = vector.multi_reduction <add>, %97, %cst_32 [1] : vector<8x32xf32> to vector<8xf32>
    %105 = vector.shape_cast %104 : vector<8xf32> to vector<8x1xf32>
    %cst_33 = arith.constant 3.200000e+01 : f32
    %106 = vector.broadcast %cst_33 : f32 to vector<8x1xf32>
    %107 = arith.divf %105, %106 : vector<8x1xf32>
    %108 = vector.broadcast %107 : vector<8x1xf32> to vector<8x32xf32>
    %109 = arith.subf %97, %108 : vector<8x32xf32>
    %110 = arith.mulf %109, %109 : vector<8x32xf32>
    %cst_34 = arith.constant dense<0.000000e+00> : vector<8xf32>
    %111 = vector.multi_reduction <add>, %110, %cst_34 [1] : vector<8x32xf32> to vector<8xf32>
    %112 = vector.shape_cast %111 : vector<8xf32> to vector<8x1xf32>
    %cst_35 = arith.constant 3.200000e+01 : f32
    %113 = vector.broadcast %cst_35 : f32 to vector<8x1xf32>
    %114 = arith.divf %112, %113 : vector<8x1xf32>
    %115 = vector.broadcast %107 : vector<8x1xf32> to vector<8x32xf32>
    %116 = arith.subf %97, %115 : vector<8x32xf32>
    %cst_36 = arith.constant 9.99999974E-6 : f32
    %117 = vector.broadcast %cst_36 : f32 to vector<8x1xf32>
    %118 = arith.addf %114, %117 : vector<8x1xf32>
    %119 = math.rsqrt %118 : vector<8x1xf32>
    %120 = vector.broadcast %119 : vector<8x1xf32> to vector<8x32xf32>
    %121 = arith.mulf %116, %120 : vector<8x32xf32>
    %122 = vector.broadcast %100 : vector<1x32xf32> to vector<8x32xf32>
    %123 = arith.mulf %121, %122 : vector<8x32xf32>
    %124 = vector.broadcast %103 : vector<1x32xf32> to vector<8x32xf32>
    %125 = arith.addf %123, %124 : vector<8x32xf32>
    %126 = arith.truncf %125 : vector<8x32xf32> to vector<8x32xbf16>
    %127 = arith.index_cast %c0_i32 : i32 to index
    %c0_37 = arith.constant 0 : index
    %c0_38 = arith.constant 0 : index
    %128 = vector.load %arg10[%127, %c0_37, %c0_38] : memref<2x32x64xbf16, #tpu.memory_space<vmem>>, vector<1x32x64xbf16>
    %129 = vector.shape_cast %128 : vector<1x32x64xbf16> to vector<32x64xbf16>
    %cst_39 = arith.constant dense<0.000000e+00> : vector<8x64xf32>
    %130 = tpu.matmul %126, %129, %cst_39 {dimension_numbers = #tpu.dot_dimension_numbers<[1], [0], [0], [1], [0, 0, 1, 1], [], []>} : vector<8x32xbf16>, vector<32x64xbf16>, vector<8x64xf32> -> vector<8x64xf32>
    %131 = arith.index_cast %c0_i32 : i32 to index
    %c0_40 = arith.constant 0 : index
    %c0_41 = arith.constant 0 : index
    %132 = vector.load %arg11[%131, %c0_40, %c0_41] : memref<2x1x64xf32, #tpu.memory_space<vmem>>, vector<1x1x64xf32>
    %133 = vector.shape_cast %132 : vector<1x1x64xf32> to vector<1x64xf32>
    %134 = vector.broadcast %133 : vector<1x64xf32> to vector<8x64xf32>
    %135 = arith.addf %130, %134 : vector<8x64xf32>
    %136 = arith.mulf %135, %135 : vector<8x64xf32>
    %137 = arith.mulf %135, %136 : vector<8x64xf32>
    %cst_42 = arith.constant 4.471500e-02 : f32
    %138 = vector.broadcast %cst_42 : f32 to vector<8x64xf32>
    %139 = arith.mulf %138, %137 : vector<8x64xf32>
    %140 = arith.addf %135, %139 : vector<8x64xf32>
    %cst_43 = arith.constant 0.797884583 : f32
    %141 = vector.broadcast %cst_43 : f32 to vector<8x64xf32>
    %142 = arith.mulf %141, %140 : vector<8x64xf32>
    %143 = math.tanh %142 : vector<8x64xf32>
    %cst_44 = arith.constant 1.000000e+00 : f32
    %144 = vector.broadcast %cst_44 : f32 to vector<8x64xf32>
    %145 = arith.addf %144, %143 : vector<8x64xf32>
    %cst_45 = arith.constant 5.000000e-01 : f32
    %146 = vector.broadcast %cst_45 : f32 to vector<8x64xf32>
    %147 = arith.mulf %146, %145 : vector<8x64xf32>
    %148 = arith.mulf %135, %147 : vector<8x64xf32>
    %149 = arith.truncf %148 : vector<8x64xf32> to vector<8x64xbf16>
    %150 = arith.index_cast %c0_i32 : i32 to index
    %c0_46 = arith.constant 0 : index
    %c0_47 = arith.constant 0 : index
    %151 = vector.load %arg12[%150, %c0_46, %c0_47] : memref<2x64x32xbf16, #tpu.memory_space<vmem>>, vector<1x64x32xbf16>
    %152 = vector.shape_cast %151 : vector<1x64x32xbf16> to vector<64x32xbf16>
    %cst_48 = arith.constant dense<0.000000e+00> : vector<8x32xf32>
    %153 = tpu.matmul %149, %152, %cst_48 {dimension_numbers = #tpu.dot_dimension_numbers<[1], [0], [0], [1], [0, 0, 1, 1], [], []>} : vector<8x64xbf16>, vector<64x32xbf16>, vector<8x32xf32> -> vector<8x32xf32>
    %154 = arith.index_cast %c0_i32 : i32 to index
    %c0_49 = arith.constant 0 : index
    %c0_50 = arith.constant 0 : index
    %155 = vector.load %arg13[%154, %c0_49, %c0_50] : memref<2x1x32xf32, #tpu.memory_space<vmem>>, vector<1x1x32xf32>
    %156 = vector.shape_cast %155 : vector<1x1x32xf32> to vector<1x32xf32>
    %157 = vector.broadcast %156 : vector<1x32xf32> to vector<8x32xf32>
    %158 = arith.addf %153, %157 : vector<8x32xf32>
    %159 = arith.addf %97, %158 : vector<8x32xf32>
    %c1_i32 = arith.constant 1 : i32
    %160 = arith.index_cast %c1_i32 : i32 to index
    %c0_51 = arith.constant 0 : index
    %c0_52 = arith.constant 0 : index
    %161 = vector.load %arg2[%160, %c0_51, %c0_52] : memref<2x1x32xf32, #tpu.memory_space<vmem>>, vector<1x1x32xf32>
    %162 = vector.shape_cast %161 : vector<1x1x32xf32> to vector<1x32xf32>
    %163 = arith.index_cast %c1_i32 : i32 to index
    %c0_53 = arith.constant 0 : index
    %c0_54 = arith.constant 0 : index
    %164 = vector.load %arg3[%163, %c0_53, %c0_54] : memref<2x1x32xf32, #tpu.memory_space<vmem>>, vector<1x1x32xf32>
    %165 = vector.shape_cast %164 : vector<1x1x32xf32> to vector<1x32xf32>
    %cst_55 = arith.constant dense<0.000000e+00> : vector<8xf32>
    %166 = vector.multi_reduction <add>, %159, %cst_55 [1] : vector<8x32xf32> to vector<8xf32>
    %167 = vector.shape_cast %166 : vector<8xf32> to vector<8x1xf32>
    %cst_56 = arith.constant 3.200000e+01 : f32
    %168 = vector.broadcast %cst_56 : f32 to vector<8x1xf32>
    %169 = arith.divf %167, %168 : vector<8x1xf32>
    %170 = vector.broadcast %169 : vector<8x1xf32> to vector<8x32xf32>
    %171 = arith.subf %159, %170 : vector<8x32xf32>
    %172 = arith.mulf %171, %171 : vector<8x32xf32>
    %cst_57 = arith.constant dense<0.000000e+00> : vector<8xf32>
    %173 = vector.multi_reduction <add>, %172, %cst_57 [1] : vector<8x32xf32> to vector<8xf32>
    %174 = vector.shape_cast %173 : vector<8xf32> to vector<8x1xf32>
    %cst_58 = arith.constant 3.200000e+01 : f32
    %175 = vector.broadcast %cst_58 : f32 to vector<8x1xf32>
    %176 = arith.divf %174, %175 : vector<8x1xf32>
    %177 = vector.broadcast %169 : vector<8x1xf32> to vector<8x32xf32>
    %178 = arith.subf %159, %177 : vector<8x32xf32>
    %cst_59 = arith.constant 9.99999974E-6 : f32
    %179 = vector.broadcast %cst_59 : f32 to vector<8x1xf32>
    %180 = arith.addf %176, %179 : vector<8x1xf32>
    %181 = math.rsqrt %180 : vector<8x1xf32>
    %182 = vector.broadcast %181 : vector<8x1xf32> to vector<8x32xf32>
    %183 = arith.mulf %178, %182 : vector<8x32xf32>
    %184 = vector.broadcast %162 : vector<1x32xf32> to vector<8x32xf32>
    %185 = arith.mulf %183, %184 : vector<8x32xf32>
    %186 = vector.broadcast %165 : vector<1x32xf32> to vector<8x32xf32>
    %187 = arith.addf %185, %186 : vector<8x32xf32>
    %188 = arith.truncf %187 : vector<8x32xf32> to vector<8x32xbf16>
    %189 = arith.index_cast %c1_i32 : i32 to index
    %c0_60 = arith.constant 0 : index
    %c0_61 = arith.constant 0 : index
    %190 = vector.load %arg4[%189, %c0_60, %c0_61] : memref<2x32x96xbf16, #tpu.memory_space<vmem>>, vector<1x32x96xbf16>
    %191 = vector.shape_cast %190 : vector<1x32x96xbf16> to vector<32x96xbf16>
    %cst_62 = arith.constant dense<0.000000e+00> : vector<8x96xf32>
    %192 = tpu.matmul %188, %191, %cst_62 {dimension_numbers = #tpu.dot_dimension_numbers<[1], [0], [0], [1], [0, 0, 1, 1], [], []>} : vector<8x32xbf16>, vector<32x96xbf16>, vector<8x96xf32> -> vector<8x96xf32>
    %193 = arith.index_cast %c1_i32 : i32 to index
    %c0_63 = arith.constant 0 : index
    %c0_64 = arith.constant 0 : index
    %194 = vector.load %arg5[%193, %c0_63, %c0_64] : memref<2x1x96xf32, #tpu.memory_space<vmem>>, vector<1x1x96xf32>
    %195 = vector.shape_cast %194 : vector<1x1x96xf32> to vector<1x96xf32>
    %196 = vector.broadcast %195 : vector<1x96xf32> to vector<8x96xf32>
    %197 = arith.addf %192, %196 : vector<8x96xf32>
    %198 = vector.extract_strided_slice %197 {offsets = [0, 0], sizes = [8, 16], strides = [1, 1]} : vector<8x96xf32> to vector<8x16xf32>
    %199 = vector.extract_strided_slice %197 {offsets = [0, 32], sizes = [8, 16], strides = [1, 1]} : vector<8x96xf32> to vector<8x16xf32>
    %200 = vector.extract_strided_slice %197 {offsets = [0, 64], sizes = [8, 16], strides = [1, 1]} : vector<8x96xf32> to vector<8x16xf32>
    %201 = vector.shape_cast %198 : vector<8x16xf32> to vector<1x8x16xf32>
    %202 = arith.truncf %201 : vector<1x8x16xf32> to vector<1x8x16xbf16>
    %203 = vector.shape_cast %199 : vector<8x16xf32> to vector<1x8x16xf32>
    %204 = arith.truncf %203 : vector<1x8x16xf32> to vector<1x8x16xbf16>
    %205 = vector.shape_cast %200 : vector<8x16xf32> to vector<1x8x16xf32>
    %206 = arith.truncf %205 : vector<1x8x16xf32> to vector<1x8x16xbf16>
    "tpu.trace_start"() <{level = 10 : i32, message = "bnd,bmd->bnm"}> : () -> ()
    %cst_65 = arith.constant dense<0.000000e+00> : vector<1x8x8xf32>
    %207 = tpu.matmul %202, %204, %cst_65 {dimension_numbers = #tpu.dot_dimension_numbers<[2], [2], [1], [1], [0, 0, 0, 1, 1, 1], [0], [0]>} : vector<1x8x16xbf16>, vector<1x8x16xbf16>, vector<1x8x8xf32> -> vector<1x8x8xf32>
    "tpu.trace_stop"() : () -> ()
    %cst_66 = arith.constant dense<0xFF800000> : vector<1x8xf32>
    %208 = vector.multi_reduction <maximumf>, %207, %cst_66 [2] : vector<1x8x8xf32> to vector<1x8xf32>
    %209 = vector.shape_cast %208 : vector<1x8xf32> to vector<1x8x1xf32>
    %210 = vector.broadcast %209 : vector<1x8x1xf32> to vector<1x8x8xf32>
    %211 = arith.subf %207, %210 : vector<1x8x8xf32>
    %212 = math.exp %211 : vector<1x8x8xf32>
    %cst_67 = arith.constant dense<0.000000e+00> : vector<1x8xf32>
    %213 = vector.multi_reduction <add>, %212, %cst_67 [2] : vector<1x8x8xf32> to vector<1x8xf32>
    %214 = vector.shape_cast %213 : vector<1x8xf32> to vector<1x8x1xf32>
    %215 = tpu.reciprocal %214 {approx = true} : vector<1x8x1xf32> -> vector<1x8x1xf32>
    %216 = vector.broadcast %215 : vector<1x8x1xf32> to vector<1x8x8xf32>
    %217 = arith.mulf %212, %216 : vector<1x8x8xf32>
    %218 = arith.truncf %217 : vector<1x8x8xf32> to vector<1x8x8xbf16>
    "tpu.trace_start"() <{level = 10 : i32, message = "bnm,bmd->bnd"}> : () -> ()
    %cst_68 = arith.constant dense<0.000000e+00> : vector<1x8x16xf32>
    %219 = tpu.matmul %218, %206, %cst_68 {dimension_numbers = #tpu.dot_dimension_numbers<[2], [1], [1], [2], [0, 0, 0, 1, 1, 2], [0], [0]>} : vector<1x8x8xbf16>, vector<1x8x16xbf16>, vector<1x8x16xf32> -> vector<1x8x16xf32>
    "tpu.trace_stop"() : () -> ()
    %220 = vector.shape_cast %219 : vector<1x8x16xf32> to vector<8x16xf32>
    %221 = vector.extract_strided_slice %197 {offsets = [0, 16], sizes = [8, 16], strides = [1, 1]} : vector<8x96xf32> to vector<8x16xf32>
    %222 = vector.extract_strided_slice %197 {offsets = [0, 48], sizes = [8, 16], strides = [1, 1]} : vector<8x96xf32> to vector<8x16xf32>
    %223 = vector.extract_strided_slice %197 {offsets = [0, 80], sizes = [8, 16], strides = [1, 1]} : vector<8x96xf32> to vector<8x16xf32>
    %224 = vector.shape_cast %221 : vector<8x16xf32> to vector<1x8x16xf32>
    %225 = arith.truncf %224 : vector<1x8x16xf32> to vector<1x8x16xbf16>
    %226 = vector.shape_cast %222 : vector<8x16xf32> to vector<1x8x16xf32>
    %227 = arith.truncf %226 : vector<1x8x16xf32> to vector<1x8x16xbf16>
    %228 = vector.shape_cast %223 : vector<8x16xf32> to vector<1x8x16xf32>
    %229 = arith.truncf %228 : vector<1x8x16xf32> to vector<1x8x16xbf16>
    "tpu.trace_start"() <{level = 10 : i32, message = "bnd,bmd->bnm"}> : () -> ()
    %cst_69 = arith.constant dense<0.000000e+00> : vector<1x8x8xf32>
    %230 = tpu.matmul %225, %227, %cst_69 {dimension_numbers = #tpu.dot_dimension_numbers<[2], [2], [1], [1], [0, 0, 0, 1, 1, 1], [0], [0]>} : vector<1x8x16xbf16>, vector<1x8x16xbf16>, vector<1x8x8xf32> -> vector<1x8x8xf32>
    "tpu.trace_stop"() : () -> ()
    %cst_70 = arith.constant dense<0xFF800000> : vector<1x8xf32>
    %231 = vector.multi_reduction <maximumf>, %230, %cst_70 [2] : vector<1x8x8xf32> to vector<1x8xf32>
    %232 = vector.shape_cast %231 : vector<1x8xf32> to vector<1x8x1xf32>
    %233 = vector.broadcast %232 : vector<1x8x1xf32> to vector<1x8x8xf32>
    %234 = arith.subf %230, %233 : vector<1x8x8xf32>
    %235 = math.exp %234 : vector<1x8x8xf32>
    %cst_71 = arith.constant dense<0.000000e+00> : vector<1x8xf32>
    %236 = vector.multi_reduction <add>, %235, %cst_71 [2] : vector<1x8x8xf32> to vector<1x8xf32>
    %237 = vector.shape_cast %236 : vector<1x8xf32> to vector<1x8x1xf32>
    %238 = tpu.reciprocal %237 {approx = true} : vector<1x8x1xf32> -> vector<1x8x1xf32>
    %239 = vector.broadcast %238 : vector<1x8x1xf32> to vector<1x8x8xf32>
    %240 = arith.mulf %235, %239 : vector<1x8x8xf32>
    %241 = arith.truncf %240 : vector<1x8x8xf32> to vector<1x8x8xbf16>
    "tpu.trace_start"() <{level = 10 : i32, message = "bnm,bmd->bnd"}> : () -> ()
    %cst_72 = arith.constant dense<0.000000e+00> : vector<1x8x16xf32>
    %242 = tpu.matmul %241, %229, %cst_72 {dimension_numbers = #tpu.dot_dimension_numbers<[2], [1], [1], [2], [0, 0, 0, 1, 1, 2], [0], [0]>} : vector<1x8x8xbf16>, vector<1x8x16xbf16>, vector<1x8x16xf32> -> vector<1x8x16xf32>
    "tpu.trace_stop"() : () -> ()
    %243 = vector.shape_cast %242 : vector<1x8x16xf32> to vector<8x16xf32>
    %244 = tpu.concatenate %220, %243 in 1 : vector<8x16xf32>, vector<8x16xf32> -> vector<8x32xf32>
    %245 = arith.truncf %244 : vector<8x32xf32> to vector<8x32xbf16>
    %246 = arith.index_cast %c1_i32 : i32 to index
    %c0_73 = arith.constant 0 : index
    %c0_74 = arith.constant 0 : index
    %247 = vector.load %arg6[%246, %c0_73, %c0_74] : memref<2x32x32xbf16, #tpu.memory_space<vmem>>, vector<1x32x32xbf16>
    %248 = vector.shape_cast %247 : vector<1x32x32xbf16> to vector<32x32xbf16>
    %cst_75 = arith.constant dense<0.000000e+00> : vector<8x32xf32>
    %249 = tpu.matmul %245, %248, %cst_75 {dimension_numbers = #tpu.dot_dimension_numbers<[1], [0], [0], [1], [0, 0, 1, 1], [], []>} : vector<8x32xbf16>, vector<32x32xbf16>, vector<8x32xf32> -> vector<8x32xf32>
    %250 = arith.index_cast %c1_i32 : i32 to index
    %c0_76 = arith.constant 0 : index
    %c0_77 = arith.constant 0 : index
    %251 = vector.load %arg7[%250, %c0_76, %c0_77] : memref<2x1x32xf32, #tpu.memory_space<vmem>>, vector<1x1x32xf32>
    %252 = vector.shape_cast %251 : vector<1x1x32xf32> to vector<1x32xf32>
    %253 = vector.broadcast %252 : vector<1x32xf32> to vector<8x32xf32>
    %254 = arith.addf %249, %253 : vector<8x32xf32>
    %255 = arith.addf %159, %254 : vector<8x32xf32>
    %256 = arith.index_cast %c1_i32 : i32 to index
    %c0_78 = arith.constant 0 : index
    %c0_79 = arith.constant 0 : index
    %257 = vector.load %arg8[%256, %c0_78, %c0_79] : memref<2x1x32xf32, #tpu.memory_space<vmem>>, vector<1x1x32xf32>
    %258 = vector.shape_cast %257 : vector<1x1x32xf32> to vector<1x32xf32>
    %259 = arith.index_cast %c1_i32 : i32 to index
    %c0_80 = arith.constant 0 : index
    %c0_81 = arith.constant 0 : index
    %260 = vector.load %arg9[%259, %c0_80, %c0_81] : memref<2x1x32xf32, #tpu.memory_space<vmem>>, vector<1x1x32xf32>
    %261 = vector.shape_cast %260 : vector<1x1x32xf32> to vector<1x32xf32>
    %cst_82 = arith.constant dense<0.000000e+00> : vector<8xf32>
    %262 = vector.multi_reduction <add>, %255, %cst_82 [1] : vector<8x32xf32> to vector<8xf32>
    %263 = vector.shape_cast %262 : vector<8xf32> to vector<8x1xf32>
    %cst_83 = arith.constant 3.200000e+01 : f32
    %264 = vector.broadcast %cst_83 : f32 to vector<8x1xf32>
    %265 = arith.divf %263, %264 : vector<8x1xf32>
    %266 = vector.broadcast %265 : vector<8x1xf32> to vector<8x32xf32>
    %267 = arith.subf %255, %266 : vector<8x32xf32>
    %268 = arith.mulf %267, %267 : vector<8x32xf32>
    %cst_84 = arith.constant dense<0.000000e+00> : vector<8xf32>
    %269 = vector.multi_reduction <add>, %268, %cst_84 [1] : vector<8x32xf32> to vector<8xf32>
    %270 = vector.shape_cast %269 : vector<8xf32> to vector<8x1xf32>
    %cst_85 = arith.constant 3.200000e+01 : f32
    %271 = vector.broadcast %cst_85 : f32 to vector<8x1xf32>
    %272 = arith.divf %270, %271 : vector<8x1xf32>
    %273 = vector.broadcast %265 : vector<8x1xf32> to vector<8x32xf32>
    %274 = arith.subf %255, %273 : vector<8x32xf32>
    %cst_86 = arith.constant 9.99999974E-6 : f32
    %275 = vector.broadcast %cst_86 : f32 to vector<8x1xf32>
    %276 = arith.addf %272, %275 : vector<8x1xf32>
    %277 = math.rsqrt %276 : vector<8x1xf32>
    %278 = vector.broadcast %277 : vector<8x1xf32> to vector<8x32xf32>
    %279 = arith.mulf %274, %278 : vector<8x32xf32>
    %280 = vector.broadcast %258 : vector<1x32xf32> to vector<8x32xf32>
    %281 = arith.mulf %279, %280 : vector<8x32xf32>
    %282 = vector.broadcast %261 : vector<1x32xf32> to vector<8x32xf32>
    %283 = arith.addf %281, %282 : vector<8x32xf32>
    %284 = arith.truncf %283 : vector<8x32xf32> to vector<8x32xbf16>
    %285 = arith.index_cast %c1_i32 : i32 to index
    %c0_87 = arith.constant 0 : index
    %c0_88 = arith.constant 0 : index
    %286 = vector.load %arg10[%285, %c0_87, %c0_88] : memref<2x32x64xbf16, #tpu.memory_space<vmem>>, vector<1x32x64xbf16>
    %287 = vector.shape_cast %286 : vector<1x32x64xbf16> to vector<32x64xbf16>
    %cst_89 = arith.constant dense<0.000000e+00> : vector<8x64xf32>
    %288 = tpu.matmul %284, %287, %cst_89 {dimension_numbers = #tpu.dot_dimension_numbers<[1], [0], [0], [1], [0, 0, 1, 1], [], []>} : vector<8x32xbf16>, vector<32x64xbf16>, vector<8x64xf32> -> vector<8x64xf32>
    %289 = arith.index_cast %c1_i32 : i32 to index
    %c0_90 = arith.constant 0 : index
    %c0_91 = arith.constant 0 : index
    %290 = vector.load %arg11[%289, %c0_90, %c0_91] : memref<2x1x64xf32, #tpu.memory_space<vmem>>, vector<1x1x64xf32>
    %291 = vector.shape_cast %290 : vector<1x1x64xf32> to vector<1x64xf32>
    %292 = vector.broadcast %291 : vector<1x64xf32> to vector<8x64xf32>
    %293 = arith.addf %288, %292 : vector<8x64xf32>
    %294 = arith.mulf %293, %293 : vector<8x64xf32>
    %295 = arith.mulf %293, %294 : vector<8x64xf32>
    %cst_92 = arith.constant 4.471500e-02 : f32
    %296 = vector.broadcast %cst_92 : f32 to vector<8x64xf32>
    %297 = arith.mulf %296, %295 : vector<8x64xf32>
    %298 = arith.addf %293, %297 : vector<8x64xf32>
    %cst_93 = arith.constant 0.797884583 : f32
    %299 = vector.broadcast %cst_93 : f32 to vector<8x64xf32>
    %300 = arith.mulf %299, %298 : vector<8x64xf32>
    %301 = math.tanh %300 : vector<8x64xf32>
    %cst_94 = arith.constant 1.000000e+00 : f32
    %302 = vector.broadcast %cst_94 : f32 to vector<8x64xf32>
    %303 = arith.addf %302, %301 : vector<8x64xf32>
    %cst_95 = arith.constant 5.000000e-01 : f32
    %304 = vector.broadcast %cst_95 : f32 to vector<8x64xf32>
    %305 = arith.mulf %304, %303 : vector<8x64xf32>
    %306 = arith.mulf %293, %305 : vector<8x64xf32>
    %307 = arith.truncf %306 : vector<8x64xf32> to vector<8x64xbf16>
    %308 = arith.index_cast %c1_i32 : i32 to index
    %c0_96 = arith.constant 0 : index
    %c0_97 = arith.constant 0 : index
    %309 = vector.load %arg12[%308, %c0_96, %c0_97] : memref<2x64x32xbf16, #tpu.memory_space<vmem>>, vector<1x64x32xbf16>
    %310 = vector.shape_cast %309 : vector<1x64x32xbf16> to vector<64x32xbf16>
    %cst_98 = arith.constant dense<0.000000e+00> : vector<8x32xf32>
    %311 = tpu.matmul %307, %310, %cst_98 {dimension_numbers = #tpu.dot_dimension_numbers<[1], [0], [0], [1], [0, 0, 1, 1], [], []>} : vector<8x64xbf16>, vector<64x32xbf16>, vector<8x32xf32> -> vector<8x32xf32>
    %312 = arith.index_cast %c1_i32 : i32 to index
    %c0_99 = arith.constant 0 : index
    %c0_100 = arith.constant 0 : index
    %313 = vector.load %arg13[%312, %c0_99, %c0_100] : memref<2x1x32xf32, #tpu.memory_space<vmem>>, vector<1x1x32xf32>
    %314 = vector.shape_cast %313 : vector<1x1x32xf32> to vector<1x32xf32>
    %315 = vector.broadcast %314 : vector<1x32xf32> to vector<8x32xf32>
    %316 = arith.addf %311, %315 : vector<8x32xf32>
    %317 = arith.addf %255, %316 : vector<8x32xf32>
    %c2_i32 = arith.constant 2 : i32
    %318 = vector.shape_cast %317 : vector<8x32xf32> to vector<1x8x32xf32>
    %c0_101 = arith.constant 0 : index
    %c0_102 = arith.constant 0 : index
    %c0_103 = arith.constant 0 : index
    %319 = vector.load %arg14[%c0_101, %c0_102, %c0_103] : memref<1x8x32xf32, #tpu.memory_space<vmem>>, vector<1x8x32xf32>
    tpu.vector_store %arg14[%c0_101, %c0_102, %c0_103], %318 {strides = array<i32>} : memref<1x8x32xf32, #tpu.memory_space<vmem>>, vector<1x8x32xf32>,
    return
  }
  func.func @transform_0(%arg0: i32) -> (i32, i32, i32) {
    %c0_i32 = arith.constant 0 : i32
    %c0_i32_0 = arith.constant 0 : i32
    %c0_i32_1 = arith.constant 0 : i32
    return %arg0, %c0_i32, %c0_i32_0 : i32, i32, i32
  }
  func.func @transform_1(%arg0: i32) -> (i32, i32, i32) {
    %c0_i32 = arith.constant 0 : i32
    %c0_i32_0 = arith.constant 0 : i32
    %c0_i32_1 = arith.constant 0 : i32
    %c0_i32_2 = arith.constant 0 : i32
    return %c0_i32, %c0_i32_0, %c0_i32_1 : i32, i32, i32
  }
  func.func @transform_2(%arg0: i32) -> (i32, i32, i32) {
    %c0_i32 = arith.constant 0 : i32
    %c0_i32_0 = arith.constant 0 : i32
    %c0_i32_1 = arith.constant 0 : i32
    %c0_i32_2 = arith.constant 0 : i32
    return %c0_i32, %c0_i32_0, %c0_i32_1 : i32, i32, i32
  }
  func.func @transform_3(%arg0: i32) -> (i32, i32, i32) {
    %c0_i32 = arith.constant 0 : i32
    %c0_i32_0 = arith.constant 0 : i32
    %c0_i32_1 = arith.constant 0 : i32
    %c0_i32_2 = arith.constant 0 : i32
    return %c0_i32, %c0_i32_0, %c0_i32_1 : i32, i32, i32
  }
  func.func @transform_4(%arg0: i32) -> (i32, i32, i32) {
    %c0_i32 = arith.constant 0 : i32
    %c0_i32_0 = arith.constant 0 : i32
    %c0_i32_1 = arith.constant 0 : i32
    %c0_i32_2 = arith.constant 0 : i32
    return %c0_i32, %c0_i32_0, %c0_i32_1 : i32, i32, i32
  }
  func.func @transform_5(%arg0: i32) -> (i32, i32, i32) {
    %c0_i32 = arith.constant 0 : i32
    %c0_i32_0 = arith.constant 0 : i32
    %c0_i32_1 = arith.constant 0 : i32
    %c0_i32_2 = arith.constant 0 : i32
    return %c0_i32, %c0_i32_0, %c0_i32_1 : i32, i32, i32
  }
  func.func @transform_6(%arg0: i32) -> (i32, i32, i32) {
    %c0_i32 = arith.constant 0 : i32
    %c0_i32_0 = arith.constant 0 : i32
    %c0_i32_1 = arith.constant 0 : i32
    %c0_i32_2 = arith.constant 0 : i32
    return %c0_i32, %c0_i32_0, %c0_i32_1 : i32, i32, i32
  }
  func.func @transform_7(%arg0: i32) -> (i32, i32, i32) {
    %c0_i32 = arith.constant 0 : i32
    %c0_i32_0 = arith.constant 0 : i32
    %c0_i32_1 = arith.constant 0 : i32
    %c0_i32_2 = arith.constant 0 : i32
    return %c0_i32, %c0_i32_0, %c0_i32_1 : i32, i32, i32
  }
  func.func @transform_8(%arg0: i32) -> (i32, i32, i32) {
    %c0_i32 = arith.constant 0 : i32
    %c0_i32_0 = arith.constant 0 : i32
    %c0_i32_1 = arith.constant 0 : i32
    %c0_i32_2 = arith.constant 0 : i32
    return %c0_i32, %c0_i32_0, %c0_i32_1 : i32, i32, i32
  }
  func.func @transform_9(%arg0: i32) -> (i32, i32, i32) {
    %c0_i32 = arith.constant 0 : i32
    %c0_i32_0 = arith.constant 0 : i32
    %c0_i32_1 = arith.constant 0 : i32
    %c0_i32_2 = arith.constant 0 : i32
    return %c0_i32, %c0_i32_0, %c0_i32_1 : i32, i32, i32
  }
  func.func @transform_10(%arg0: i32) -> (i32, i32, i32) {
    %c0_i32 = arith.constant 0 : i32
    %c0_i32_0 = arith.constant 0 : i32
    %c0_i32_1 = arith.constant 0 : i32
    %c0_i32_2 = arith.constant 0 : i32
    return %c0_i32, %c0_i32_0, %c0_i32_1 : i32, i32, i32
  }
  func.func @transform_11(%arg0: i32) -> (i32, i32, i32) {
    %c0_i32 = arith.constant 0 : i32
    %c0_i32_0 = arith.constant 0 : i32
    %c0_i32_1 = arith.constant 0 : i32
    %c0_i32_2 = arith.constant 0 : i32
    return %c0_i32, %c0_i32_0, %c0_i32_1 : i32, i32, i32
  }
  func.func @transform_12(%arg0: i32) -> (i32, i32, i32) {
    %c0_i32 = arith.constant 0 : i32
    %c0_i32_0 = arith.constant 0 : i32
    %c0_i32_1 = arith.constant 0 : i32
    %c0_i32_2 = arith.constant 0 : i32
    return %c0_i32, %c0_i32_0, %c0_i32_1 : i32, i32, i32
  }
  func.func @transform_13(%arg0: i32) -> (i32, i32, i32) {
    %c0_i32 = arith.constant 0 : i32
    %c0_i32_0 = arith.constant 0 : i32
    %c0_i32_1 = arith.constant 0 : i32
    return %arg0, %c0_i32, %c0_i32_0 : i32, i32, i32
  }
}

</mosaic_0001>

<llo_original>
// kernel: tpu_custom_call.1
$region0: #{tpu_custom_call.1}
  #allocation0 [shape = 'u32[]', space=smem, size = 0x4, offset = 0x4, fixed_abs, tag = 'smem constant byte address 0x4 - core index']
  #allocation1 [shape = 'u32[144,128]{1,0:T(1,128)}', space=vmem, size = 0x12000, scoped, tag = 'internal scratch']
  %s0 = inlined_call_operand.hbm [shape: f32[2,8,32], index: 0, kind: input, shape index: {}]
  %s1 = inlined_call_operand.hbm [shape: f32[2,1,32], index: 1, kind: input, shape index: {}]
  %s2 = inlined_call_operand.vmem [shape: f32[2,1,32], index: 2, kind: input, shape index: {}]
  %s3 = inlined_call_operand.vmem [shape: bf16[2,32,96], index: 3, kind: input, shape index: {}]
  %s4 = inlined_call_operand.vmem [shape: f32[2,1,96], index: 4, kind: input, shape index: {}]
  %s5 = inlined_call_operand.vmem [shape: bf16[2,32,32], index: 5, kind: input, shape index: {}]
  %s6 = inlined_call_operand.vmem [shape: f32[2,1,32], index: 6, kind: input, shape index: {}]
  %s7 = inlined_call_operand.vmem [shape: f32[2,1,32], index: 7, kind: input, shape index: {}]
  %s8 = inlined_call_operand.vmem [shape: f32[2,1,32], index: 8, kind: input, shape index: {}]
  %s9 = inlined_call_operand.vmem [shape: bf16[2,32,64], index: 9, kind: input, shape index: {}]
  %s10 = inlined_call_operand.vmem [shape: f32[2,1,64], index: 10, kind: input, shape index: {}]
  %s11 = inlined_call_operand.vmem [shape: bf16[2,64,32], index: 11, kind: input, shape index: {}]
  %s12 = inlined_call_operand.vmem [shape: f32[2,1,32], index: 12, kind: input, shape index: {}]
  %s13 = inlined_call_operand.hbm [shape: f32[2,8,32], index: 13, kind: output, shape index: {}]
  %s14 = sld [smem:[#allocation0]]
  $region93: #{tpu_custom_call.1} parent=0
    _
  %s16 = ssub.s32 1, %s14
  %s17 = scalar_select 0, %s16, %s14
  $region1: #{tpu_custom_call.1} parent=0
    #allocation2 [shape = 'u8[8192]{0}', space=vmem, size = 0x2000, scoped, tag = 'input window, operand 0']
    #allocation3 [shape = 's32[2]{0}', space=sflag, size = 0x8, scoped, tag = 'scoped memory for tpu_custom_call.1']
    #allocation4 [shape = 's32[2]{0}', space=sflag, size = 0x8, scoped, tag = 'scoped memory for tpu_custom_call.1']
    #allocation5 [shape = 'u8[1024]{0}', space=vmem, size = 0x400, scoped, tag = 'input window, operand 1, single buffered']
    #allocation6 [shape = 's32[1]{0}', space=sflag, size = 0x4, scoped, tag = 'scoped memory for tpu_custom_call.1']
    #allocation7 [shape = 'u8[8192]{0}', space=vmem, size = 0x2000, scoped, tag = 'output window, operand 0']
    %18 = vsyncpa [#allocation3], 0
    %s19 = scalar_lea.sflag [#allocation3], 1
    %20 = vsyncpa %s19, 0
    %21 = vsyncpa [#allocation6], 0
    %22 = vsyncpa [#allocation4], 0
    %s23 = scalar_lea.sflag [#allocation4], 1
    %24 = vsyncpa %s23, 0
    loop: start=0, step=1, limit=4
    $region2: #{tpu_custom_call.1} parent=1 // loop_pre_header
      _
    $region3: #{tpu_custom_call.1} parent=1 // loop_header
      %s26 = sphi 0, %s30
      %p27 = scmp.ge.s32.totalorder %s26, 4
      %s36 = sphi 0, %s38
      %s39 = sphi 0, %s36
      %s40 = sphi 0, %s39
      %s56 = sphi 0, %s40
      %s60 = sphi 0, %s60
      %s62 = sphi 0, %s60
      %s63 = sphi 0, %s62
      %s77 = sphi 0, %s63
      %s81 = sphi 0, %s81
      %s83 = sphi 0, %s81
      %s84 = sphi 0, %s83
      %s98 = sphi 0, %s84
      %s102 = sphi 0, %s102
      %s104 = sphi 0, %s102
      %s105 = sphi 0, %s104
      %s119 = sphi 0, %s105
      %s123 = sphi 0, %s123
      %s125 = sphi 0, %s123
      %s126 = sphi 0, %s125
      %s140 = sphi 0, %s126
      %s144 = sphi 0, %s144
      %s146 = sphi 0, %s144
      %s147 = sphi 0, %s146
      %s161 = sphi 0, %s147
      %s165 = sphi 0, %s165
      %s167 = sphi 0, %s165
      %s168 = sphi 0, %s167
      %s182 = sphi 0, %s168
      %s186 = sphi 0, %s186
      %s188 = sphi 0, %s186
      %s189 = sphi 0, %s188
      %s203 = sphi 0, %s189
      %s207 = sphi 0, %s207
      %s209 = sphi 0, %s207
      %s210 = sphi 0, %s209
      %s224 = sphi 0, %s210
      %s228 = sphi 0, %s228
      %s230 = sphi 0, %s228
      %s231 = sphi 0, %s230
      %s245 = sphi 0, %s231
      %s249 = sphi 0, %s249
      %s251 = sphi 0, %s249
      %s252 = sphi 0, %s251
      %s266 = sphi 0, %s252
      %s270 = sphi 0, %s270
      %s272 = sphi 0, %s270
      %s273 = sphi 0, %s272
      %s287 = sphi 0, %s273
      %s291 = sphi 0, %s291
      %s293 = sphi 0, %s291
      %s294 = sphi 0, %s293
      %s308 = sphi 0, %s294
      %s314 = sphi 0, %s316
      %s317 = sphi 0, %s314
      %s318 = sphi 0, %s317
      %s334 = sphi 0, %s318
    $region4: #{tpu_custom_call.1} parent=1 // loop_header_branch
      %29 = sbr.rel (%p27) target = $region8
    $region5: #{tpu_custom_call.1} parent=1 // loop_body
      %s31 = ssub.s32 %s26, 1
      %s32 = ssub.s32 %s26, 2
      %s33 = sadd.s32 %s26, 1
      %s34 = ssub.s32 %s26, %s33
      %p35 = scmp.eq.s32.totalorder %s34, 0
      %s37 = sadd.s32 %s36, 1
      %s38 = scalar_select %p35, %s36, %s37
      %p41 = pneg %p35
      %p42 = scmp.eq.s32.totalorder %s26, 1
      %p43 = por %p41, %p42
      %p44 = scmp.ne.s32.totalorder %s36, %s39
      %p45 = scmp.eq.s32.totalorder %s26, 0
      %p46 = por %p44, %p45
      %p47 = scmp.ne.s32.totalorder %s36, %s39
      %p48 = scmp.eq.s32.totalorder %s31, 1
      %p49 = por %p47, %p48
      %p50 = scmp.ne.s32.totalorder %s39, %s40
      %p51 = scmp.eq.s32.totalorder %s31, 0
      %p52 = por %p50, %p51
      %p53 = scmp.ne.s32.totalorder %s39, %s40
      %p54 = scmp.eq.s32.totalorder %s32, 1
      %p55 = por %p53, %p54
      %p57 = scmp.ne.s32.totalorder %s40, %s56
      %p58 = scmp.eq.s32.totalorder %s32, 0
      %p59 = por %p57, %p58
      %s61 = sadd.s32 %s60, 1
      %p64 = scmp.eq.s32.totalorder %s26, 1
      %p65 = scmp.ne.s32.totalorder %s60, %s62
      %p66 = scmp.eq.s32.totalorder %s26, 0
      %p67 = por %p65, %p66
      %p68 = scmp.ne.s32.totalorder %s60, %s62
      %p69 = scmp.eq.s32.totalorder %s31, 1
      %p70 = por %p68, %p69
      %p71 = scmp.ne.s32.totalorder %s62, %s63
      %p72 = scmp.eq.s32.totalorder %s31, 0
      %p73 = por %p71, %p72
      %p74 = scmp.ne.s32.totalorder %s62, %s63
      %p75 = scmp.eq.s32.totalorder %s32, 1
      %p76 = por %p74, %p75
      %p78 = scmp.ne.s32.totalorder %s63, %s77
      %p79 = scmp.eq.s32.totalorder %s32, 0
      %p80 = por %p78, %p79
      %s82 = sadd.s32 %s81, 1
      %p85 = scmp.eq.s32.totalorder %s26, 1
      %p86 = scmp.ne.s32.totalorder %s81, %s83
      %p87 = scmp.eq.s32.totalorder %s26, 0
      %p88 = por %p86, %p87
      %p89 = scmp.ne.s32.totalorder %s81, %s83
      %p90 = scmp.eq.s32.totalorder %s31, 1
      %p91 = por %p89, %p90
      %p92 = scmp.ne.s32.totalorder %s83, %s84
      %p93 = scmp.eq.s32.totalorder %s31, 0
      %p94 = por %p92, %p93
      %p95 = scmp.ne.s32.totalorder %s83, %s84
      %p96 = scmp.eq.s32.totalorder %s32, 1
      %p97 = por %p95, %p96
      %p99 = scmp.ne.s32.totalorder %s84, %s98
      %p100 = scmp.eq.s32.totalorder %s32, 0
      %p101 = por %p99, %p100
      %s103 = sadd.s32 %s102, 1
      %p106 = scmp.eq.s32.totalorder %s26, 1
      %p107 = scmp.ne.s32.totalorder %s102, %s104
      %p108 = scmp.eq.s32.totalorder %s26, 0
      %p109 = por %p107, %p108
      %p110 = scmp.ne.s32.totalorder %s102, %s104
      %p111 = scmp.eq.s32.totalorder %s31, 1
      %p112 = por %p110, %p111
      %p113 = scmp.ne.s32.totalorder %s104, %s105
      %p114 = scmp.eq.s32.totalorder %s31, 0
      %p115 = por %p113, %p114
      %p116 = scmp.ne.s32.totalorder %s104, %s105
      %p117 = scmp.eq.s32.totalorder %s32, 1
      %p118 = por %p116, %p117
      %p120 = scmp.ne.s32.totalorder %s105, %s119
      %p121 = scmp.eq.s32.totalorder %s32, 0
      %p122 = por %p120, %p121
      %s124 = sadd.s32 %s123, 1
      %p127 = scmp.eq.s32.totalorder %s26, 1
      %p128 = scmp.ne.s32.totalorder %s123, %s125
      %p129 = scmp.eq.s32.totalorder %s26, 0
      %p130 = por %p128, %p129
      %p131 = scmp.ne.s32.totalorder %s123, %s125
      %p132 = scmp.eq.s32.totalorder %s31, 1
      %p133 = por %p131, %p132
      %p134 = scmp.ne.s32.totalorder %s125, %s126
      %p135 = scmp.eq.s32.totalorder %s31, 0
      %p136 = por %p134, %p135
      %p137 = scmp.ne.s32.totalorder %s125, %s126
      %p138 = scmp.eq.s32.totalorder %s32, 1
      %p139 = por %p137, %p138
      %p141 = scmp.ne.s32.totalorder %s126, %s140
      %p142 = scmp.eq.s32.totalorder %s32, 0
      %p143 = por %p141, %p142
      %s145 = sadd.s32 %s144, 1
      %p148 = scmp.eq.s32.totalorder %s26, 1
      %p149 = scmp.ne.s32.totalorder %s144, %s146
      %p150 = scmp.eq.s32.totalorder %s26, 0
      %p151 = por %p149, %p150
      %p152 = scmp.ne.s32.totalorder %s144, %s146
      %p153 = scmp.eq.s32.totalorder %s31, 1
      %p154 = por %p152, %p153
      %p155 = scmp.ne.s32.totalorder %s146, %s147
      %p156 = scmp.eq.s32.totalorder %s31, 0
      %p157 = por %p155, %p156
      %p158 = scmp.ne.s32.totalorder %s146, %s147
      %p159 = scmp.eq.s32.totalorder %s32, 1
      %p160 = por %p158, %p159
      %p162 = scmp.ne.s32.totalorder %s147, %s161
      %p163 = scmp.eq.s32.totalorder %s32, 0
      %p164 = por %p162, %p163
      %s166 = sadd.s32 %s165, 1
      %p169 = scmp.eq.s32.totalorder %s26, 1
      %p170 = scmp.ne.s32.totalorder %s165, %s167
      %p171 = scmp.eq.s32.totalorder %s26, 0
      %p172 = por %p170, %p171
      %p173 = scmp.ne.s32.totalorder %s165, %s167
      %p174 = scmp.eq.s32.totalorder %s31, 1
      %p175 = por %p173, %p174
      %p176 = scmp.ne.s32.totalorder %s167, %s168
      %p177 = scmp.eq.s32.totalorder %s31, 0
      %p178 = por %p176, %p177
      %p179 = scmp.ne.s32.totalorder %s167, %s168
      %p180 = scmp.eq.s32.totalorder %s32, 1
      %p181 = por %p179, %p180
      %p183 = scmp.ne.s32.totalorder %s168, %s182
      %p184 = scmp.eq.s32.totalorder %s32, 0
      %p185 = por %p183, %p184
      %s187 = sadd.s32 %s186, 1
      %p190 = scmp.eq.s32.totalorder %s26, 1
      %p191 = scmp.ne.s32.totalorder %s186, %s188
      %p192 = scmp.eq.s32.totalorder %s26, 0
      %p193 = por %p191, %p192
      %p194 = scmp.ne.s32.totalorder %s186, %s188
      %p195 = scmp.eq.s32.totalorder %s31, 1
      %p196 = por %p194, %p195
      %p197 = scmp.ne.s32.totalorder %s188, %s189
      %p198 = scmp.eq.s32.totalorder %s31, 0
      %p199 = por %p197, %p198
      %p200 = scmp.ne.s32.totalorder %s188, %s189
      %p201 = scmp.eq.s32.totalorder %s32, 1
      %p202 = por %p200, %p201
      %p204 = scmp.ne.s32.totalorder %s189, %s203
      %p205 = scmp.eq.s32.totalorder %s32, 0
      %p206 = por %p204, %p205
      %s208 = sadd.s32 %s207, 1
      %p211 = scmp.eq.s32.totalorder %s26, 1
      %p212 = scmp.ne.s32.totalorder %s207, %s209
      %p213 = scmp.eq.s32.totalorder %s26, 0
      %p214 = por %p212, %p213
      %p215 = scmp.ne.s32.totalorder %s207, %s209
      %p216 = scmp.eq.s32.totalorder %s31, 1
      %p217 = por %p215, %p216
      %p218 = scmp.ne.s32.totalorder %s209, %s210
      %p219 = scmp.eq.s32.totalorder %s31, 0
      %p220 = por %p218, %p219
      %p221 = scmp.ne.s32.totalorder %s209, %s210
      %p222 = scmp.eq.s32.totalorder %s32, 1
      %p223 = por %p221, %p222
      %p225 = scmp.ne.s32.totalorder %s210, %s224
      %p226 = scmp.eq.s32.totalorder %s32, 0
      %p227 = por %p225, %p226
      %s229 = sadd.s32 %s228, 1
      %p232 = scmp.eq.s32.totalorder %s26, 1
      %p233 = scmp.ne.s32.totalorder %s228, %s230
      %p234 = scmp.eq.s32.totalorder %s26, 0
      %p235 = por %p233, %p234
      %p236 = scmp.ne.s32.totalorder %s228, %s230
      %p237 = scmp.eq.s32.totalorder %s31, 1
      %p238 = por %p236, %p237
      %p239 = scmp.ne.s32.totalorder %s230, %s231
      %p240 = scmp.eq.s32.totalorder %s31, 0
      %p241 = por %p239, %p240
      %p242 = scmp.ne.s32.totalorder %s230, %s231
      %p243 = scmp.eq.s32.totalorder %s32, 1
      %p244 = por %p242, %p243
      %p246 = scmp.ne.s32.totalorder %s231, %s245
      %p247 = scmp.eq.s32.totalorder %s32, 0
      %p248 = por %p246, %p247
      %s250 = sadd.s32 %s249, 1
      %p253 = scmp.eq.s32.totalorder %s26, 1
      %p254 = scmp.ne.s32.totalorder %s249, %s251
      %p255 = scmp.eq.s32.totalorder %s26, 0
      %p256 = por %p254, %p255
      %p257 = scmp.ne.s32.totalorder %s249, %s251
      %p258 = scmp.eq.s32.totalorder %s31, 1
      %p259 = por %p257, %p258
      %p260 = scmp.ne.s32.totalorder %s251, %s252
      %p261 = scmp.eq.s32.totalorder %s31, 0
      %p262 = por %p260, %p261
      %p263 = scmp.ne.s32.totalorder %s251, %s252
      %p264 = scmp.eq.s32.totalorder %s32, 1
      %p265 = por %p263, %p264
      %p267 = scmp.ne.s32.totalorder %s252, %s266
      %p268 = scmp.eq.s32.totalorder %s32, 0
      %p269 = por %p267, %p268
      %s271 = sadd.s32 %s270, 1
      %p274 = scmp.eq.s32.totalorder %s26, 1
      %p275 = scmp.ne.s32.totalorder %s270, %s272
      %p276 = scmp.eq.s32.totalorder %s26, 0
      %p277 = por %p275, %p276
      %p278 = scmp.ne.s32.totalorder %s270, %s272
      %p279 = scmp.eq.s32.totalorder %s31, 1
      %p280 = por %p278, %p279
      %p281 = scmp.ne.s32.totalorder %s272, %s273
      %p282 = scmp.eq.s32.totalorder %s31, 0
      %p283 = por %p281, %p282
      %p284 = scmp.ne.s32.totalorder %s272, %s273
      %p285 = scmp.eq.s32.totalorder %s32, 1
      %p286 = por %p284, %p285
      %p288 = scmp.ne.s32.totalorder %s273, %s287
      %p289 = scmp.eq.s32.totalorder %s32, 0
      %p290 = por %p288, %p289
      %s292 = sadd.s32 %s291, 1
      %p295 = scmp.eq.s32.totalorder %s26, 1
      %p296 = scmp.ne.s32.totalorder %s291, %s293
      %p297 = scmp.eq.s32.totalorder %s26, 0
      %p298 = por %p296, %p297
      %p299 = scmp.ne.s32.totalorder %s291, %s293
      %p300 = scmp.eq.s32.totalorder %s31, 1
      %p301 = por %p299, %p300
      %p302 = scmp.ne.s32.totalorder %s293, %s294
      %p303 = scmp.eq.s32.totalorder %s31, 0
      %p304 = por %p302, %p303
      %p305 = scmp.ne.s32.totalorder %s293, %s294
      %p306 = scmp.eq.s32.totalorder %s32, 1
      %p307 = por %p305, %p306
      %p309 = scmp.ne.s32.totalorder %s294, %s308
      %p310 = scmp.eq.s32.totalorder %s32, 0
      %p311 = por %p309, %p310
      %s312 = ssub.s32 %s26, %s33
      %p313 = scmp.eq.s32.totalorder %s312, 0
      %s315 = sadd.s32 %s314, 1
      %s316 = scalar_select %p313, %s314, %s315
      %p319 = pneg %p313
      %p320 = scmp.eq.s32.totalorder %s26, 1
      %p321 = por %p319, %p320
      %p322 = scmp.ne.s32.totalorder %s314, %s317
      %p323 = scmp.eq.s32.totalorder %s26, 0
      %p324 = por %p322, %p323
      %p325 = scmp.ne.s32.totalorder %s314, %s317
      %p326 = scmp.eq.s32.totalorder %s31, 1
      %p327 = por %p325, %p326
      %p328 = scmp.ne.s32.totalorder %s317, %s318
      %p329 = scmp.eq.s32.totalorder %s31, 0
      %p330 = por %p328, %p329
      %p331 = scmp.ne.s32.totalorder %s317, %s318
      %p332 = scmp.eq.s32.totalorder %s32, 1
      %p333 = por %p331, %p332
      %p335 = scmp.ne.s32.totalorder %s318, %s334
      %p336 = scmp.eq.s32.totalorder %s32, 0
      %p337 = por %p335, %p336
      %p338 = scmp.le.s32.totalorder 1, %s26
      %p339 = scmp.lt.s32.totalorder %s26, 3
      %p340 = pnand %p338, %p339
      %p341 = pneg %p340
      // Predicated region
      $region9: #{tpu_custom_call.1} parent=5 // pred_check
        _
      $region10: #{tpu_custom_call.1} parent=5 // pred_check_branch
        %343 = sbr.rel (%p340) target = $region12
      $region11: #{tpu_custom_call.1} parent=5 // pred_region
        %s344 = ssub.s32 %s26, 1
        // Predicated region
        $region13: #{tpu_custom_call.1} parent=11 // pred_check
          %p345 = pneg %p73
        $region14: #{tpu_custom_call.1} parent=11 // pred_check_branch
          %347 = sbr.rel (%p345) target = $region16
        $region15: #{tpu_custom_call.1} parent=11 // pred_region
          %s349 = ssub.s32 32, 32
          %350 = vsyncadd [#allocation6], %s349
          %s351 = sshll.u32 [#allocation5], 4
          %s352 = int_to_ptr.vmem [resolvable:$true] %s351
          %357 = dma.hbm_to_vmem [thread:$0]  %s1, 32, %s352, [#allocation6], 16, 16, 1
        $region16: #{tpu_custom_call.1} parent=11 // pred_fallthru
          _
        // Predicated region
        $region17: #{tpu_custom_call.1} parent=11 // pred_check
          %p358 = pneg %p94
        $region18: #{tpu_custom_call.1} parent=11 // pred_check_branch
          %360 = sbr.rel (%p358) target = $region20
        $region19: #{tpu_custom_call.1} parent=11 // pred_region
          _
        $region20: #{tpu_custom_call.1} parent=11 // pred_fallthru
          _
        // Predicated region
        $region21: #{tpu_custom_call.1} parent=11 // pred_check
          %p361 = pneg %p115
        $region22: #{tpu_custom_call.1} parent=11 // pred_check_branch
          %363 = sbr.rel (%p361) target = $region24
        $region23: #{tpu_custom_call.1} parent=11 // pred_region
          _
        $region24: #{tpu_custom_call.1} parent=11 // pred_fallthru
          _
        // Predicated region
        $region25: #{tpu_custom_call.1} parent=11 // pred_check
          %p364 = pneg %p136
        $region26: #{tpu_custom_call.1} parent=11 // pred_check_branch
          %366 = sbr.rel (%p364) target = $region28
        $region27: #{tpu_custom_call.1} parent=11 // pred_region
          _
        $region28: #{tpu_custom_call.1} parent=11 // pred_fallthru
          _
        // Predicated region
        $region29: #{tpu_custom_call.1} parent=11 // pred_check
          %p367 = pneg %p157
        $region30: #{tpu_custom_call.1} parent=11 // pred_check_branch
          %369 = sbr.rel (%p367) target = $region32
        $region31: #{tpu_custom_call.1} parent=11 // pred_region
          _
        $region32: #{tpu_custom_call.1} parent=11 // pred_fallthru
          _
        // Predicated region
        $region33: #{tpu_custom_call.1} parent=11 // pred_check
          %p370 = pneg %p178
        $region34: #{tpu_custom_call.1} parent=11 // pred_check_branch
          %372 = sbr.rel (%p370) target = $region36
        $region35: #{tpu_custom_call.1} parent=11 // pred_region
          _
        $region36: #{tpu_custom_call.1} parent=11 // pred_fallthru
          _
        // Predicated region
        $region37: #{tpu_custom_call.1} parent=11 // pred_check
          %p373 = pneg %p199
        $region38: #{tpu_custom_call.1} parent=11 // pred_check_branch
          %375 = sbr.rel (%p373) target = $region40
        $region39: #{tpu_custom_call.1} parent=11 // pred_region
          _
        $region40: #{tpu_custom_call.1} parent=11 // pred_fallthru
          _
        // Predicated region
        $region41: #{tpu_custom_call.1} parent=11 // pred_check
          %p376 = pneg %p220
        $region42: #{tpu_custom_call.1} parent=11 // pred_check_branch
          %378 = sbr.rel (%p376) target = $region44
        $region43: #{tpu_custom_call.1} parent=11 // pred_region
          _
        $region44: #{tpu_custom_call.1} parent=11 // pred_fallthru
          _
        // Predicated region
        $region45: #{tpu_custom_call.1} parent=11 // pred_check
          %p379 = pneg %p241
        $region46: #{tpu_custom_call.1} parent=11 // pred_check_branch
          %381 = sbr.rel (%p379) target = $region48
        $region47: #{tpu_custom_call.1} parent=11 // pred_region
          _
        $region48: #{tpu_custom_call.1} parent=11 // pred_fallthru
          _
        // Predicated region
        $region49: #{tpu_custom_call.1} parent=11 // pred_check
          %p382 = pneg %p262
        $region50: #{tpu_custom_call.1} parent=11 // pred_check_branch
          %384 = sbr.rel (%p382) target = $region52
        $region51: #{tpu_custom_call.1} parent=11 // pred_region
          _
        $region52: #{tpu_custom_call.1} parent=11 // pred_fallthru
          _
        // Predicated region
        $region53: #{tpu_custom_call.1} parent=11 // pred_check
          %p385 = pneg %p283
        $region54: #{tpu_custom_call.1} parent=11 // pred_check_branch
          %387 = sbr.rel (%p385) target = $region56
        $region55: #{tpu_custom_call.1} parent=11 // pred_region
          _
        $region56: #{tpu_custom_call.1} parent=11 // pred_fallthru
          _
        // Predicated region
        $region57: #{tpu_custom_call.1} parent=11 // pred_check
          %p388 = pneg %p304
        $region58: #{tpu_custom_call.1} parent=11 // pred_check_branch
          %390 = sbr.rel (%p388) target = $region60
        $region59: #{tpu_custom_call.1} parent=11 // pred_region
          _
        $region60: #{tpu_custom_call.1} parent=11 // pred_fallthru
          _
      $region12: #{tpu_custom_call.1} parent=5 // pred_fallthru
        _
      %p391 = scmp.lt.s32.totalorder %s26, 2
      // Predicated region
      $region61: #{tpu_custom_call.1} parent=5 // pred_check
        %p392 = pneg %p391
      $region62: #{tpu_custom_call.1} parent=5 // pred_check_branch
        %394 = sbr.rel (%p392) target = $region64
      $region63: #{tpu_custom_call.1} parent=5 // pred_region
        // Predicated region
        $region65: #{tpu_custom_call.1} parent=63 // pred_check
          %p395 = pneg %p46
        $region66: #{tpu_custom_call.1} parent=63 // pred_check_branch
          %397 = sbr.rel (%p395) target = $region68
        $region67: #{tpu_custom_call.1} parent=63 // pred_region
          %s398 = sand.u32 %s36, 1
          %s399 = scalar_lea.sflag [#allocation3], %s398
          %s400 = sand.u32 %s36, 1
          %s401 = smul.addr %s400, 8
          %s402 = scalar_lea.vmem [#allocation2], %s401
          %s404 = ssub.s32 128, 128
          %405 = vsyncadd %s399, %s404
          %s406 = smul.addr %s26, 128
          %s407 = scalar_lea.hbm %s0, %s406
          %s409 = sshll.u32 %s402, 4
          %s410 = int_to_ptr.vmem [resolvable:$true] %s409
          %412 = dma.hbm_to_vmem [thread:$0]  %s407, 128, %s410, %s399
        $region68: #{tpu_custom_call.1} parent=63 // pred_fallthru
          _
      $region64: #{tpu_custom_call.1} parent=5 // pred_fallthru
        _
      %p413 = scmp.le.s32.totalorder 1, %s26
      %p414 = scmp.lt.s32.totalorder %s26, 3
      %p415 = pnand %p413, %p414
      %p416 = pneg %p415
      // Predicated region
      $region69: #{tpu_custom_call.1} parent=5 // pred_check
        _
      $region70: #{tpu_custom_call.1} parent=5 // pred_check_branch
        %418 = sbr.rel (%p415) target = $region72
      $region71: #{tpu_custom_call.1} parent=5 // pred_region
        %s419 = ssub.s32 %s26, 1
        %s420 = sand.u32 %s39, 1
        %s421 = scalar_lea.sflag [#allocation3], %s420
        %s422 = sand.u32 %s39, 1
        %s423 = smul.addr %s422, 8
        %s424 = scalar_lea.vmem [#allocation2], %s423
        // Predicated region
        $region73: #{tpu_custom_call.1} parent=71 // pred_check
          %p425 = pneg %p52
        $region74: #{tpu_custom_call.1} parent=71 // pred_check_branch
          %427 = sbr.rel (%p425) target = $region76
        $region75: #{tpu_custom_call.1} parent=71 // pred_region
          %428 = dma.done %s421, 128
        $region76: #{tpu_custom_call.1} parent=71 // pred_fallthru
          _
        // Predicated region
        $region77: #{tpu_custom_call.1} parent=71 // pred_check
          %p429 = pneg %p73
        $region78: #{tpu_custom_call.1} parent=71 // pred_check_branch
          %431 = sbr.rel (%p429) target = $region80
        $region79: #{tpu_custom_call.1} parent=71 // pred_region
          %432 = dma.done [#allocation6], 32
        $region80: #{tpu_custom_call.1} parent=71 // pred_fallthru
          _
        %s433 = sand.u32 %s39, 1
        %s434 = scalar_lea.sflag [#allocation3], %s433
        %s435 = sand.u32 %s39, 1
        %s436 = smul.addr %s435, 8
        %s437 = scalar_lea.vmem [#allocation2], %s436
        %p438 = pneg %p52
        %p439 = pneg %p49
        %p440 = pneg %p73
        %p441 = pneg %p70
        %p442 = pneg %p94
        %p443 = pneg %p91
        %p444 = pneg %p115
        %p445 = pneg %p112
        %p446 = pneg %p136
        %p447 = pneg %p133
        %p448 = pneg %p157
        %p449 = pneg %p154
        %p450 = pneg %p178
        %p451 = pneg %p175
        %p452 = pneg %p199
        %p453 = pneg %p196
        %p454 = pneg %p220
        %p455 = pneg %p217
        %p456 = pneg %p241
        %p457 = pneg %p238
        %p458 = pneg %p262
        %p459 = pneg %p259
        %p460 = pneg %p283
        %p461 = pneg %p280
        %p462 = pneg %p304
        %p463 = pneg %p301
        %p464 = pneg %p330
        %p465 = pneg %p327
        %s466 = sand.u32 %s317, 1
        %s467 = scalar_lea.sflag [#allocation4], %s466
        %s468 = sand.u32 %s317, 1
        %s469 = smul.addr %s468, 8
        %s470 = scalar_lea.vmem [#allocation7], %s469
        %v472 = vld [vmem:[%s424] sm:$0xff]
        %v473 = vld [vmem:[#allocation5] sm:$0x1]
        %v474 = vld [vmem:[%s2] sm:$0x1]
        %vm475 = vcmask 261120
        %v476 = vsel %vm475, %v472, 0.0
        %477 = vadd.xlane.f32.xlu0 %v476
        %v478 = vpop.xlane.xlu0 %477
        %v479 = vrcp.pop 32.0
        %v480 = vmul.f32 %v478, %v479
        %v481 = vsub.f32 %v472, %v480
        %v482 = vmul.f32 %v481, %v481
        %v483 = vsel %vm475, %v482, 0.0
        %484 = vadd.xlane.f32.xlu0 %v483
        %v485 = vpop.xlane.xlu0 %484
        %v486 = vmul.f32 %v485, %v479
        %v487 = vadd.f32 %v486, 1e-05
        %v488 = vrsqrt.pop %v487
        %v489 = vmul.f32 %v481, %v488
        %v491 = vlaneseq
        %v492 = vshrl.u32 %v491, 7
        %v493 = vsub.s32 0, %v492
        %v494 = vrot.slane %v473, %v493
        %v496 = vmul.f32 %v489, %v494
        %v498 = vlaneseq
        %v499 = vshrl.u32 %v498, 7
        %v500 = vsub.s32 0, %v499
        %v501 = vrot.slane %v474, %v500
        %v503 = vadd.f32 %v496, %v501
        %v504 = vpack.c.bf16 %v503, %v503
        %v505 = vld [vmem:[%s3] sm:$0xf]
        %v506 = vld [vmem:[%s3 + $0x4] sm:$0xf]
        %v507 = vld [vmem:[%s3 + $0x8] sm:$0xf]
        %v508 = vld [vmem:[%s3 + $0xc] sm:$0xf]
        %v509 = vld [vmem:[%s4] sm:$0x1]
        %v511 = vlaneseq
        %v512 = vshrl.u32 %v511, 7
        %v513 = vsub.s32 0, %v512
        %v514 = vrot.slane %v509, %v513
        %v520 = vunpack.c.l.b16 %v505
        %v521 = vunpack.c.l.b16 %v506
        %v522 = vunpack.c.l.b16 %v507
        %v523 = vunpack.c.l.b16 %v508
        %v524 = vpack.c.b16 %v521, %v520
        %v525 = vpack.c.b16 %v523, %v522
        %v529 = vsel %vm475, %v504, 0
        %531 = vmatprep.subr.bf16.mxu0 0
        %532 = vmatpush1.bf16.msra.mxu0 0
        %533 = vmatprep.subr.bf16.mxu0 0
        %534 = vmatpush1.bf16.msra.mxu0 0
        %535 = vmatprep.subr.bf16.mxu0 0
        %536 = vmatpush1.bf16.msra.mxu0 0
        %537 = vmatprep.subr.bf16.mxu0 0
        %538 = vmatpush1.bf16.msra.mxu0 0
        %539 = vmatprep.subr.bf16.mxu0 0
        %540 = vmatpush1.bf16.msra.mxu0 0
        %541 = vmatprep.subr.bf16.mxu0 0
        %542 = vmatpush1.bf16.msra.mxu0 0
        %543 = vmatprep.subr.bf16.mxu0 0
        %544 = vmatpush1.bf16.msra.mxu0 %v525
        %545 = vmatprep.subr.bf16.mxu0 0
        %546 = vmatpush1.bf16.msra.mxu0 %v524
        %547 = vmatprep.subr.bf16.mxu0 0
        %548 = vmatpush2.bf16.msra.mxu0 0
        %549 = vmatprep.subr.bf16.mxu0 0
        %550 = vmatpush2.bf16.msra.mxu0 0
        %551 = vmatprep.subr.bf16.mxu0 0
        %552 = vmatpush2.bf16.msra.mxu0 0
        %553 = vmatprep.subr.bf16.mxu0 0
        %554 = vmatpush2.bf16.msra.mxu0 0
        %555 = vmatprep.subr.bf16.mxu0 0
        %556 = vmatpush2.bf16.msra.mxu0 0
        %557 = vmatprep.subr.bf16.mxu0 0
        %558 = vmatpush2.bf16.msra.mxu0 0
        %559 = vmatprep.subr.bf16.mxu0 0
        %560 = vmatpush2.bf16.msra.mxu0 0
        %561 = vmatprep.subr.bf16.mxu0 0
        %562 = vmatpush2.bf16.msra.mxu0 0
        %563 = vmatprep.mubr.bf16.mxu0 0
        %564 = vmatmul.mubr.bf16.gmra.mxu0 %v529
        %v565 = vpop.f32.mrf.mxu0
        %v566 = vadd.f32 %v514, %v565
        %v567 = vpop.f32.mrf.mxu0
        %v568 = vpop.f32.mrf.mxu0
        %v569 = vpop.f32.mrf.mxu0
        %570 = vdwg.mxu0
        %v571 = vpack.c.bf16 %v566, %v566
        %573 = vrot.lane.b32.xlu0 %v571, 96
        %v574 = vpop.permute.xlu0 %573
        %vm575 = vcmask 130048
        %v577 = vsel %vm575, %v571, 0
        %v580 = vsel %vm575, %v574, 0
        %582 = vmatprep.subr.bf16.mxu0 0
        %583 = vmatpush1.bf16.xpose.msra.mxu0 0
        %584 = vmatprep.subr.bf16.mxu0 0
        %585 = vmatpush1.bf16.xpose.msra.mxu0 0
        %586 = vmatprep.subr.bf16.mxu0 0
        %587 = vmatpush1.bf16.xpose.msra.mxu0 0
        %588 = vmatprep.subr.bf16.mxu0 0
        %589 = vmatpush1.bf16.xpose.msra.mxu0 0
        %590 = vmatprep.subr.bf16.mxu0 0
        %591 = vmatpush1.bf16.xpose.msra.mxu0 0
        %592 = vmatprep.subr.bf16.mxu0 0
        %593 = vmatpush1.bf16.xpose.msra.mxu0 0
        %594 = vmatprep.subr.bf16.mxu0 0
        %595 = vmatpush1.bf16.xpose.msra.mxu0 0
        %596 = vmatprep.subr.bf16.mxu0 0
        %597 = vmatpush1.bf16.xpose.msra.mxu0 %v580
        %598 = vmatprep.subr.bf16.mxu0 0
        %599 = vmatpush2.bf16.xpose.msra.mxu0 0
        %600 = vmatprep.subr.bf16.mxu0 0
        %601 = vmatpush2.bf16.xpose.msra.mxu0 0
        %602 = vmatprep.subr.bf16.mxu0 0
        %603 = vmatpush2.bf16.xpose.msra.mxu0 0
        %604 = vmatprep.subr.bf16.mxu0 0
        %605 = vmatpush2.bf16.xpose.msra.mxu0 0
        %606 = vmatprep.subr.bf16.mxu0 0
        %607 = vmatpush2.bf16.xpose.msra.mxu0 0
        %608 = vmatprep.subr.bf16.mxu0 0
        %609 = vmatpush2.bf16.xpose.msra.mxu0 0
        %610 = vmatprep.subr.bf16.mxu0 0
        %611 = vmatpush2.bf16.xpose.msra.mxu0 0
        %612 = vmatprep.subr.bf16.mxu0 0
        %613 = vmatpush2.bf16.xpose.msra.mxu0 0
        %614 = vmatprep.mubr.bf16.mxu0 0
        %615 = vmatmul.mubr.bf16.gmra.mxu0 %v577
        %v616 = vpop.f32.mrf.mxu0
        %v617 = vadd.f32 0.0, %v616
        %v618 = vpop.f32.mrf.mxu0
        %v619 = vpop.f32.mrf.mxu0
        %v620 = vpop.f32.mrf.mxu0
        %621 = vdwg.mxu0
        %vm622 = vcmask 64512
        %v623 = vsel %vm622, %v617, -inf
        %624 = vmax.xlane.f32.xlu0 %v623
        %v625 = vpop.xlane.xlu0 %624
        %v626 = vsub.f32 %v617, %v625
        %v627 = vmul.f32 %v626, 1.442695
        %v628 = vpow.pop %v627
        %v629 = vsel %vm622, %v628, 0.0
        %630 = vadd.xlane.f32.xlu0 %v629
        %v631 = vpop.xlane.xlu0 %630
        %v632 = vrcp.pop %v631
        %v633 = vmul.f32 %v628, %v632
        %v634 = vpack.c.bf16 %v633, %v633
        %635 = vrot.lane.b32.xlu0 %v571, 64
        %v636 = vpop.permute.xlu0 %635
        %v638 = vsel %vm622, %v634, 0
        %vm640 = vcmask 1043456
        %v642 = vsel %vm640, %v636, 0
        %644 = vmatprep.subr.bf16.mxu0 0
        %645 = vmatpush1.bf16.msra.mxu0 0
        %646 = vmatprep.subr.bf16.mxu0 0
        %647 = vmatpush1.bf16.msra.mxu0 0
        %648 = vmatprep.subr.bf16.mxu0 0
        %649 = vmatpush1.bf16.msra.mxu0 0
        %650 = vmatprep.subr.bf16.mxu0 0
        %651 = vmatpush1.bf16.msra.mxu0 0
        %652 = vmatprep.subr.bf16.mxu0 0
        %653 = vmatpush1.bf16.msra.mxu0 0
        %654 = vmatprep.subr.bf16.mxu0 0
        %655 = vmatpush1.bf16.msra.mxu0 0
        %656 = vmatprep.subr.bf16.mxu0 0
        %657 = vmatpush1.bf16.msra.mxu0 0
        %658 = vmatprep.subr.bf16.mxu0 0
        %659 = vmatpush1.bf16.msra.mxu0 %v642
        %660 = vmatprep.subr.bf16.mxu0 0
        %661 = vmatpush2.bf16.msra.mxu0 0
        %662 = vmatprep.subr.bf16.mxu0 0
        %663 = vmatpush2.bf16.msra.mxu0 0
        %664 = vmatprep.subr.bf16.mxu0 0
        %665 = vmatpush2.bf16.msra.mxu0 0
        %666 = vmatprep.subr.bf16.mxu0 0
        %667 = vmatpush2.bf16.msra.mxu0 0
        %668 = vmatprep.subr.bf16.mxu0 0
        %669 = vmatpush2.bf16.msra.mxu0 0
        %670 = vmatprep.subr.bf16.mxu0 0
        %671 = vmatpush2.bf16.msra.mxu0 0
        %672 = vmatprep.subr.bf16.mxu0 0
        %673 = vmatpush2.bf16.msra.mxu0 0
        %674 = vmatprep.subr.bf16.mxu0 0
        %675 = vmatpush2.bf16.msra.mxu0 0
        %676 = vmatprep.mubr.bf16.mxu0 0
        %677 = vmatmul.mubr.bf16.gmra.mxu0 %v638
        %v678 = vpop.f32.mrf.mxu0
        %v679 = vadd.f32 0.0, %v678
        %v680 = vpop.f32.mrf.mxu0
        %v681 = vpop.f32.mrf.mxu0
        %v682 = vpop.f32.mrf.mxu0
        %683 = vdwg.mxu0
        %684 = vrot.lane.b32.xlu0 %v571, 112
        %v685 = vpop.permute.xlu0 %684
        %686 = vrot.lane.b32.xlu0 %v571, 80
        %v687 = vpop.permute.xlu0 %686
        %v689 = vsel %vm575, %v685, 0
        %v692 = vsel %vm575, %v687, 0
        %694 = vmatprep.subr.bf16.mxu0 0
        %695 = vmatpush1.bf16.xpose.msra.mxu0 0
        %696 = vmatprep.subr.bf16.mxu0 0
        %697 = vmatpush1.bf16.xpose.msra.mxu0 0
        %698 = vmatprep.subr.bf16.mxu0 0
        %699 = vmatpush1.bf16.xpose.msra.mxu0 0
        %700 = vmatprep.subr.bf16.mxu0 0
        %701 = vmatpush1.bf16.xpose.msra.mxu0 0
        %702 = vmatprep.subr.bf16.mxu0 0
        %703 = vmatpush1.bf16.xpose.msra.mxu0 0
        %704 = vmatprep.subr.bf16.mxu0 0
        %705 = vmatpush1.bf16.xpose.msra.mxu0 0
        %706 = vmatprep.subr.bf16.mxu0 0
        %707 = vmatpush1.bf16.xpose.msra.mxu0 0
        %708 = vmatprep.subr.bf16.mxu0 0
        %709 = vmatpush1.bf16.xpose.msra.mxu0 %v692
        %710 = vmatprep.subr.bf16.mxu0 0
        %711 = vmatpush2.bf16.xpose.msra.mxu0 0
        %712 = vmatprep.subr.bf16.mxu0 0
        %713 = vmatpush2.bf16.xpose.msra.mxu0 0
        %714 = vmatprep.subr.bf16.mxu0 0
        %715 = vmatpush2.bf16.xpose.msra.mxu0 0
        %716 = vmatprep.subr.bf16.mxu0 0
        %717 = vmatpush2.bf16.xpose.msra.mxu0 0
        %718 = vmatprep.subr.bf16.mxu0 0
        %719 = vmatpush2.bf16.xpose.msra.mxu0 0
        %720 = vmatprep.subr.bf16.mxu0 0
        %721 = vmatpush2.bf16.xpose.msra.mxu0 0
        %722 = vmatprep.subr.bf16.mxu0 0
        %723 = vmatpush2.bf16.xpose.msra.mxu0 0
        %724 = vmatprep.subr.bf16.mxu0 0
        %725 = vmatpush2.bf16.xpose.msra.mxu0 0
        %726 = vmatprep.mubr.bf16.mxu0 0
        %727 = vmatmul.mubr.bf16.gmra.mxu0 %v689
        %v728 = vpop.f32.mrf.mxu0
        %v729 = vadd.f32 0.0, %v728
        %v730 = vpop.f32.mrf.mxu0
        %v731 = vpop.f32.mrf.mxu0
        %v732 = vpop.f32.mrf.mxu0
        %733 = vdwg.mxu0
        %v734 = vsel %vm622, %v729, -inf
        %735 = vmax.xlane.f32.xlu0 %v734
        %v736 = vpop.xlane.xlu0 %735
        %v737 = vsub.f32 %v729, %v736
        %v738 = vmul.f32 %v737, 1.442695
        %v739 = vpow.pop %v738
        %v740 = vsel %vm622, %v739, 0.0
        %741 = vadd.xlane.f32.xlu0 %v740
        %v742 = vpop.xlane.xlu0 %741
        %v743 = vrcp.pop %v742
        %v744 = vmul.f32 %v739, %v743
        %v745 = vpack.c.bf16 %v744, %v744
        %746 = vrot.lane.b32.xlu0 %v571, 48
        %v747 = vpop.permute.xlu0 %746
        %v749 = vsel %vm622, %v745, 0
        %v752 = vsel %vm640, %v747, 0
        %754 = vmatprep.subr.bf16.mxu0 0
        %755 = vmatpush1.bf16.msra.mxu0 0
        %756 = vmatprep.subr.bf16.mxu0 0
        %757 = vmatpush1.bf16.msra.mxu0 0
        %758 = vmatprep.subr.bf16.mxu0 0
        %759 = vmatpush1.bf16.msra.mxu0 0
        %760 = vmatprep.subr.bf16.mxu0 0
        %761 = vmatpush1.bf16.msra.mxu0 0
        %762 = vmatprep.subr.bf16.mxu0 0
        %763 = vmatpush1.bf16.msra.mxu0 0
        %764 = vmatprep.subr.bf16.mxu0 0
        %765 = vmatpush1.bf16.msra.mxu0 0
        %766 = vmatprep.subr.bf16.mxu0 0
        %767 = vmatpush1.bf16.msra.mxu0 0
        %768 = vmatprep.subr.bf16.mxu0 0
        %769 = vmatpush1.bf16.msra.mxu0 %v752
        %770 = vmatprep.subr.bf16.mxu0 0
        %771 = vmatpush2.bf16.msra.mxu0 0
        %772 = vmatprep.subr.bf16.mxu0 0
        %773 = vmatpush2.bf16.msra.mxu0 0
        %774 = vmatprep.subr.bf16.mxu0 0
        %775 = vmatpush2.bf16.msra.mxu0 0
        %776 = vmatprep.subr.bf16.mxu0 0
        %777 = vmatpush2.bf16.msra.mxu0 0
        %778 = vmatprep.subr.bf16.mxu0 0
        %779 = vmatpush2.bf16.msra.mxu0 0
        %780 = vmatprep.subr.bf16.mxu0 0
        %781 = vmatpush2.bf16.msra.mxu0 0
        %782 = vmatprep.subr.bf16.mxu0 0
        %783 = vmatpush2.bf16.msra.mxu0 0
        %784 = vmatprep.subr.bf16.mxu0 0
        %785 = vmatpush2.bf16.msra.mxu0 0
        %786 = vmatprep.mubr.bf16.mxu0 0
        %787 = vmatmul.mubr.bf16.gmra.mxu0 %v749
        %v788 = vpop.f32.mrf.mxu0
        %v789 = vadd.f32 0.0, %v788
        %v790 = vpop.f32.mrf.mxu0
        %v791 = vpop.f32.mrf.mxu0
        %v792 = vpop.f32.mrf.mxu0
        %793 = vdwg.mxu0
        %795 = vrot.lane.b32.xlu0 %v789, 16
        %v796 = vpop.permute.xlu0 %795
        %v798 = vsel %vm575, %v679, %v796
        %v799 = vpack.c.bf16 %v798, %v798
        %v800 = vld [vmem:[%s5] sm:$0xf]
        %v801 = vld [vmem:[%s5 + $0x4] sm:$0xf]
        %v802 = vld [vmem:[%s5 + $0x8] sm:$0xf]
        %v803 = vld [vmem:[%s5 + $0xc] sm:$0xf]
        %v804 = vld [vmem:[%s6] sm:$0x1]
        %v806 = vlaneseq
        %v807 = vshrl.u32 %v806, 7
        %v808 = vsub.s32 0, %v807
        %v809 = vrot.slane %v804, %v808
        %v815 = vunpack.c.l.b16 %v800
        %v816 = vunpack.c.l.b16 %v801
        %v817 = vunpack.c.l.b16 %v802
        %v818 = vunpack.c.l.b16 %v803
        %v819 = vpack.c.b16 %v816, %v815
        %v820 = vpack.c.b16 %v818, %v817
        %v824 = vsel %vm475, %v799, 0
        %826 = vmatprep.subr.bf16.mxu0 0
        %827 = vmatpush1.bf16.msra.mxu0 0
        %828 = vmatprep.subr.bf16.mxu0 0
        %829 = vmatpush1.bf16.msra.mxu0 0
        %830 = vmatprep.subr.bf16.mxu0 0
        %831 = vmatpush1.bf16.msra.mxu0 0
        %832 = vmatprep.subr.bf16.mxu0 0
        %833 = vmatpush1.bf16.msra.mxu0 0
        %834 = vmatprep.subr.bf16.mxu0 0
        %835 = vmatpush1.bf16.msra.mxu0 0
        %836 = vmatprep.subr.bf16.mxu0 0
        %837 = vmatpush1.bf16.msra.mxu0 0
        %838 = vmatprep.subr.bf16.mxu0 0
        %839 = vmatpush1.bf16.msra.mxu0 %v820
        %840 = vmatprep.subr.bf16.mxu0 0
        %841 = vmatpush1.bf16.msra.mxu0 %v819
        %842 = vmatprep.subr.bf16.mxu0 0
        %843 = vmatpush2.bf16.msra.mxu0 0
        %844 = vmatprep.subr.bf16.mxu0 0
        %845 = vmatpush2.bf16.msra.mxu0 0
        %846 = vmatprep.subr.bf16.mxu0 0
        %847 = vmatpush2.bf16.msra.mxu0 0
        %848 = vmatprep.subr.bf16.mxu0 0
        %849 = vmatpush2.bf16.msra.mxu0 0
        %850 = vmatprep.subr.bf16.mxu0 0
        %851 = vmatpush2.bf16.msra.mxu0 0
        %852 = vmatprep.subr.bf16.mxu0 0
        %853 = vmatpush2.bf16.msra.mxu0 0
        %854 = vmatprep.subr.bf16.mxu0 0
        %855 = vmatpush2.bf16.msra.mxu0 0
        %856 = vmatprep.subr.bf16.mxu0 0
        %857 = vmatpush2.bf16.msra.mxu0 0
        %858 = vmatprep.mubr.bf16.mxu0 0
        %859 = vmatmul.mubr.bf16.gmra.mxu0 %v824
        %v860 = vpop.f32.mrf.mxu0
        %v861 = vadd.f32 %v809, %v860
        %v862 = vpop.f32.mrf.mxu0
        %v863 = vpop.f32.mrf.mxu0
        %v864 = vpop.f32.mrf.mxu0
        %865 = vdwg.mxu0
        %v866 = vadd.f32 %v472, %v861
        %v867 = vld [vmem:[%s7] sm:$0x1]
        %v868 = vld [vmem:[%s8] sm:$0x1]
        %v869 = vsel %vm475, %v866, 0.0
        %870 = vadd.xlane.f32.xlu0 %v869
        %v871 = vpop.xlane.xlu0 %870
        %v872 = vmul.f32 %v871, %v479
        %v873 = vsub.f32 %v866, %v872
        %v874 = vmul.f32 %v873, %v873
        %v875 = vsel %vm475, %v874, 0.0
        %876 = vadd.xlane.f32.xlu0 %v875
        %v877 = vpop.xlane.xlu0 %876
        %v878 = vmul.f32 %v877, %v479
        %v879 = vadd.f32 %v878, 1e-05
        %v880 = vrsqrt.pop %v879
        %v881 = vmul.f32 %v873, %v880
        %v883 = vlaneseq
        %v884 = vshrl.u32 %v883, 7
        %v885 = vsub.s32 0, %v884
        %v886 = vrot.slane %v867, %v885
        %v888 = vmul.f32 %v881, %v886
        %v890 = vlaneseq
        %v891 = vshrl.u32 %v890, 7
        %v892 = vsub.s32 0, %v891
        %v893 = vrot.slane %v868, %v892
        %v895 = vadd.f32 %v888, %v893
        %v896 = vpack.c.bf16 %v895, %v895
        %v897 = vld [vmem:[%s9] sm:$0xf]
        %v898 = vld [vmem:[%s9 + $0x4] sm:$0xf]
        %v899 = vld [vmem:[%s9 + $0x8] sm:$0xf]
        %v900 = vld [vmem:[%s9 + $0xc] sm:$0xf]
        %v901 = vld [vmem:[%s10] sm:$0x1]
        %v903 = vlaneseq
        %v904 = vshrl.u32 %v903, 7
        %v905 = vsub.s32 0, %v904
        %v906 = vrot.slane %v901, %v905
        %v912 = vunpack.c.l.b16 %v897
        %v913 = vunpack.c.l.b16 %v898
        %v914 = vunpack.c.l.b16 %v899
        %v915 = vunpack.c.l.b16 %v900
        %v916 = vpack.c.b16 %v913, %v912
        %v917 = vpack.c.b16 %v915, %v914
        %v921 = vsel %vm475, %v896, 0
        %923 = vmatprep.subr.bf16.mxu0 0
        %924 = vmatpush1.bf16.msra.mxu0 0
        %925 = vmatprep.subr.bf16.mxu0 0
        %926 = vmatpush1.bf16.msra.mxu0 0
        %927 = vmatprep.subr.bf16.mxu0 0
        %928 = vmatpush1.bf16.msra.mxu0 0
        %929 = vmatprep.subr.bf16.mxu0 0
        %930 = vmatpush1.bf16.msra.mxu0 0
        %931 = vmatprep.subr.bf16.mxu0 0
        %932 = vmatpush1.bf16.msra.mxu0 0
        %933 = vmatprep.subr.bf16.mxu0 0
        %934 = vmatpush1.bf16.msra.mxu0 0
        %935 = vmatprep.subr.bf16.mxu0 0
        %936 = vmatpush1.bf16.msra.mxu0 %v917
        %937 = vmatprep.subr.bf16.mxu0 0
        %938 = vmatpush1.bf16.msra.mxu0 %v916
        %939 = vmatprep.subr.bf16.mxu0 0
        %940 = vmatpush2.bf16.msra.mxu0 0
        %941 = vmatprep.subr.bf16.mxu0 0
        %942 = vmatpush2.bf16.msra.mxu0 0
        %943 = vmatprep.subr.bf16.mxu0 0
        %944 = vmatpush2.bf16.msra.mxu0 0
        %945 = vmatprep.subr.bf16.mxu0 0
        %946 = vmatpush2.bf16.msra.mxu0 0
        %947 = vmatprep.subr.bf16.mxu0 0
        %948 = vmatpush2.bf16.msra.mxu0 0
        %949 = vmatprep.subr.bf16.mxu0 0
        %950 = vmatpush2.bf16.msra.mxu0 0
        %951 = vmatprep.subr.bf16.mxu0 0
        %952 = vmatpush2.bf16.msra.mxu0 0
        %953 = vmatprep.subr.bf16.mxu0 0
        %954 = vmatpush2.bf16.msra.mxu0 0
        %955 = vmatprep.mubr.bf16.mxu0 0
        %956 = vmatmul.mubr.bf16.gmra.mxu0 %v921
        %v957 = vpop.f32.mrf.mxu0
        %v958 = vadd.f32 %v906, %v957
        %v959 = vpop.f32.mrf.mxu0
        %v960 = vpop.f32.mrf.mxu0
        %v961 = vpop.f32.mrf.mxu0
        %962 = vdwg.mxu0
        %v963 = vmul.f32 %v958, %v958
        %v964 = vmul.f32 %v958, %v963
        %v965 = vmul.f32 %v964, 0.044715
        %v966 = vadd.f32 %v958, %v965
        %v967 = vmul.f32 %v966, 0.7978846
        %v968 = vtanh.pop %v967
        %v969 = vadd.f32 %v968, 1.0
        %v970 = vmul.f32 %v969, 0.5
        %v971 = vmul.f32 %v958, %v970
        %v972 = vpack.c.bf16 %v971, %v971
        %v973 = vld [vmem:[%s11] sm:$0xf]
        %v974 = vld [vmem:[%s11 + $0x4] sm:$0xf]
        %v975 = vld [vmem:[%s11 + $0x8] sm:$0xf]
        %v976 = vld [vmem:[%s11 + $0xc] sm:$0xf]
        %v977 = vld [vmem:[%s11 + $0x10] sm:$0xf]
        %v978 = vld [vmem:[%s11 + $0x14] sm:$0xf]
        %v979 = vld [vmem:[%s11 + $0x18] sm:$0xf]
        %v980 = vld [vmem:[%s11 + $0x1c] sm:$0xf]
        %v981 = vld [vmem:[%s12] sm:$0x1]
        %v983 = vlaneseq
        %v984 = vshrl.u32 %v983, 7
        %v985 = vsub.s32 0, %v984
        %v986 = vrot.slane %v981, %v985
        %v996 = vunpack.c.l.b16 %v973
        %v997 = vunpack.c.l.b16 %v974
        %v998 = vunpack.c.l.b16 %v975
        %v999 = vunpack.c.l.b16 %v976
        %v1000 = vunpack.c.l.b16 %v977
        %v1001 = vunpack.c.l.b16 %v978
        %v1002 = vunpack.c.l.b16 %v979
        %v1003 = vunpack.c.l.b16 %v980
        %v1004 = vpack.c.b16 %v997, %v996
        %v1005 = vpack.c.b16 %v999, %v998
        %v1006 = vpack.c.b16 %v1001, %v1000
        %v1007 = vpack.c.b16 %v1003, %v1002
        %vm1012 = vcmask 523264
        %v1014 = vsel %vm1012, %v972, 0
        %1016 = vmatprep.subr.bf16.mxu0 0
        %1017 = vmatpush1.bf16.msra.mxu0 0
        %1018 = vmatprep.subr.bf16.mxu0 0
        %1019 = vmatpush1.bf16.msra.mxu0 0
        %1020 = vmatprep.subr.bf16.mxu0 0
        %1021 = vmatpush1.bf16.msra.mxu0 0
        %1022 = vmatprep.subr.bf16.mxu0 0
        %1023 = vmatpush1.bf16.msra.mxu0 0
        %1024 = vmatprep.subr.bf16.mxu0 0
        %1025 = vmatpush1.bf16.msra.mxu0 %v1007
        %1026 = vmatprep.subr.bf16.mxu0 0
        %1027 = vmatpush1.bf16.msra.mxu0 %v1006
        %1028 = vmatprep.subr.bf16.mxu0 0
        %1029 = vmatpush1.bf16.msra.mxu0 %v1005
        %1030 = vmatprep.subr.bf16.mxu0 0
        %1031 = vmatpush1.bf16.msra.mxu0 %v1004
        %1032 = vmatprep.subr.bf16.mxu0 0
        %1033 = vmatpush2.bf16.msra.mxu0 0
        %1034 = vmatprep.subr.bf16.mxu0 0
        %1035 = vmatpush2.bf16.msra.mxu0 0
        %1036 = vmatprep.subr.bf16.mxu0 0
        %1037 = vmatpush2.bf16.msra.mxu0 0
        %1038 = vmatprep.subr.bf16.mxu0 0
        %1039 = vmatpush2.bf16.msra.mxu0 0
        %1040 = vmatprep.subr.bf16.mxu0 0
        %1041 = vmatpush2.bf16.msra.mxu0 0
        %1042 = vmatprep.subr.bf16.mxu0 0
        %1043 = vmatpush2.bf16.msra.mxu0 0
        %1044 = vmatprep.subr.bf16.mxu0 0
        %1045 = vmatpush2.bf16.msra.mxu0 0
        %1046 = vmatprep.subr.bf16.mxu0 0
        %1047 = vmatpush2.bf16.msra.mxu0 0
        %1048 = vmatprep.mubr.bf16.mxu0 0
        %1049 = vmatmul.mubr.bf16.gmra.mxu0 %v1014
        %v1050 = vpop.f32.mrf.mxu0
        %v1051 = vadd.f32 %v986, %v1050
        %v1052 = vpop.f32.mrf.mxu0
        %v1053 = vpop.f32.mrf.mxu0
        %v1054 = vpop.f32.mrf.mxu0
        %1055 = vdwg.mxu0
        %v1056 = vadd.f32 %v866, %v1051
        %s1057 = scalar_lea.vmem [#allocation5], 1
        %v1058 = vld [vmem:[%s1057] sm:$0x1]
        %s1059 = scalar_lea.vmem %s2, 1
        %v1060 = vld [vmem:[%s1059] sm:$0x1]
        %v1061 = vsel %vm475, %v1056, 0.0
        %1062 = vadd.xlane.f32.xlu0 %v1061
        %v1063 = vpop.xlane.xlu0 %1062
        %v1064 = vmul.f32 %v1063, %v479
        %v1065 = vsub.f32 %v1056, %v1064
        %v1066 = vmul.f32 %v1065, %v1065
        %v1067 = vsel %vm475, %v1066, 0.0
        %1068 = vadd.xlane.f32.xlu0 %v1067
        %v1069 = vpop.xlane.xlu0 %1068
        %v1070 = vmul.f32 %v1069, %v479
        %v1071 = vadd.f32 %v1070, 1e-05
        %v1072 = vrsqrt.pop %v1071
        %v1073 = vmul.f32 %v1065, %v1072
        %v1075 = vlaneseq
        %v1076 = vshrl.u32 %v1075, 7
        %v1077 = vsub.s32 0, %v1076
        %v1078 = vrot.slane %v1058, %v1077
        %v1080 = vmul.f32 %v1073, %v1078
        %v1082 = vlaneseq
        %v1083 = vshrl.u32 %v1082, 7
        %v1084 = vsub.s32 0, %v1083
        %v1085 = vrot.slane %v1060, %v1084
        %v1087 = vadd.f32 %v1080, %v1085
        %v1088 = vpack.c.bf16 %v1087, %v1087
        %s1089 = scalar_lea.vmem %s3, 16
        %v1090 = vld [vmem:[%s1089] sm:$0xf]
        %v1091 = vld [vmem:[%s1089 + $0x4] sm:$0xf]
        %v1092 = vld [vmem:[%s1089 + $0x8] sm:$0xf]
        %v1093 = vld [vmem:[%s1089 + $0xc] sm:$0xf]
        %s1094 = scalar_lea.vmem %s4, 1
        %v1095 = vld [vmem:[%s1094] sm:$0x1]
        %v1097 = vlaneseq
        %v1098 = vshrl.u32 %v1097, 7
        %v1099 = vsub.s32 0, %v1098
        %v1100 = vrot.slane %v1095, %v1099
        %v1106 = vunpack.c.l.b16 %v1090
        %v1107 = vunpack.c.l.b16 %v1091
        %v1108 = vunpack.c.l.b16 %v1092
        %v1109 = vunpack.c.l.b16 %v1093
        %v1110 = vpack.c.b16 %v1107, %v1106
        %v1111 = vpack.c.b16 %v1109, %v1108
        %v1115 = vsel %vm475, %v1088, 0
        %1117 = vmatprep.subr.bf16.mxu0 0
        %1118 = vmatpush1.bf16.msra.mxu0 0
        %1119 = vmatprep.subr.bf16.mxu0 0
        %1120 = vmatpush1.bf16.msra.mxu0 0
        %1121 = vmatprep.subr.bf16.mxu0 0
        %1122 = vmatpush1.bf16.msra.mxu0 0
        %1123 = vmatprep.subr.bf16.mxu0 0
        %1124 = vmatpush1.bf16.msra.mxu0 0
        %1125 = vmatprep.subr.bf16.mxu0 0
        %1126 = vmatpush1.bf16.msra.mxu0 0
        %1127 = vmatprep.subr.bf16.mxu0 0
        %1128 = vmatpush1.bf16.msra.mxu0 0
        %1129 = vmatprep.subr.bf16.mxu0 0
        %1130 = vmatpush1.bf16.msra.mxu0 %v1111
        %1131 = vmatprep.subr.bf16.mxu0 0
        %1132 = vmatpush1.bf16.msra.mxu0 %v1110
        %1133 = vmatprep.subr.bf16.mxu0 0
        %1134 = vmatpush2.bf16.msra.mxu0 0
        %1135 = vmatprep.subr.bf16.mxu0 0
        %1136 = vmatpush2.bf16.msra.mxu0 0
        %1137 = vmatprep.subr.bf16.mxu0 0
        %1138 = vmatpush2.bf16.msra.mxu0 0
        %1139 = vmatprep.subr.bf16.mxu0 0
        %1140 = vmatpush2.bf16.msra.mxu0 0
        %1141 = vmatprep.subr.bf16.mxu0 0
        %1142 = vmatpush2.bf16.msra.mxu0 0
        %1143 = vmatprep.subr.bf16.mxu0 0
        %1144 = vmatpush2.bf16.msra.mxu0 0
        %1145 = vmatprep.subr.bf16.mxu0 0
        %1146 = vmatpush2.bf16.msra.mxu0 0
        %1147 = vmatprep.subr.bf16.mxu0 0
        %1148 = vmatpush2.bf16.msra.mxu0 0
        %1149 = vmatprep.mubr.bf16.mxu0 0
        %1150 = vmatmul.mubr.bf16.gmra.mxu0 %v1115
        %v1151 = vpop.f32.mrf.mxu0
        %v1152 = vadd.f32 %v1100, %v1151
        %v1153 = vpop.f32.mrf.mxu0
        %v1154 = vpop.f32.mrf.mxu0
        %v1155 = vpop.f32.mrf.mxu0
        %1156 = vdwg.mxu0
        %v1157 = vpack.c.bf16 %v1152, %v1152
        %1159 = vrot.lane.b32.xlu0 %v1157, 96
        %v1160 = vpop.permute.xlu0 %1159
        %v1162 = vsel %vm575, %v1157, 0
        %v1165 = vsel %vm575, %v1160, 0
        %1167 = vmatprep.subr.bf16.mxu0 0
        %1168 = vmatpush1.bf16.xpose.msra.mxu0 0
        %1169 = vmatprep.subr.bf16.mxu0 0
        %1170 = vmatpush1.bf16.xpose.msra.mxu0 0
        %1171 = vmatprep.subr.bf16.mxu0 0
        %1172 = vmatpush1.bf16.xpose.msra.mxu0 0
        %1173 = vmatprep.subr.bf16.mxu0 0
        %1174 = vmatpush1.bf16.xpose.msra.mxu0 0
        %1175 = vmatprep.subr.bf16.mxu0 0
        %1176 = vmatpush1.bf16.xpose.msra.mxu0 0
        %1177 = vmatprep.subr.bf16.mxu0 0
        %1178 = vmatpush1.bf16.xpose.msra.mxu0 0
        %1179 = vmatprep.subr.bf16.mxu0 0
        %1180 = vmatpush1.bf16.xpose.msra.mxu0 0
        %1181 = vmatprep.subr.bf16.mxu0 0
        %1182 = vmatpush1.bf16.xpose.msra.mxu0 %v1165
        %1183 = vmatprep.subr.bf16.mxu0 0
        %1184 = vmatpush2.bf16.xpose.msra.mxu0 0
        %1185 = vmatprep.subr.bf16.mxu0 0
        %1186 = vmatpush2.bf16.xpose.msra.mxu0 0
        %1187 = vmatprep.subr.bf16.mxu0 0
        %1188 = vmatpush2.bf16.xpose.msra.mxu0 0
        %1189 = vmatprep.subr.bf16.mxu0 0
        %1190 = vmatpush2.bf16.xpose.msra.mxu0 0
        %1191 = vmatprep.subr.bf16.mxu0 0
        %1192 = vmatpush2.bf16.xpose.msra.mxu0 0
        %1193 = vmatprep.subr.bf16.mxu0 0
        %1194 = vmatpush2.bf16.xpose.msra.mxu0 0
        %1195 = vmatprep.subr.bf16.mxu0 0
        %1196 = vmatpush2.bf16.xpose.msra.mxu0 0
        %1197 = vmatprep.subr.bf16.mxu0 0
        %1198 = vmatpush2.bf16.xpose.msra.mxu0 0
        %1199 = vmatprep.mubr.bf16.mxu0 0
        %1200 = vmatmul.mubr.bf16.gmra.mxu0 %v1162
        %v1201 = vpop.f32.mrf.mxu0
        %v1202 = vadd.f32 0.0, %v1201
        %v1203 = vpop.f32.mrf.mxu0
        %v1204 = vpop.f32.mrf.mxu0
        %v1205 = vpop.f32.mrf.mxu0
        %1206 = vdwg.mxu0
        %v1207 = vsel %vm622, %v1202, -inf
        %1208 = vmax.xlane.f32.xlu0 %v1207
        %v1209 = vpop.xlane.xlu0 %1208
        %v1210 = vsub.f32 %v1202, %v1209
        %v1211 = vmul.f32 %v1210, 1.442695
        %v1212 = vpow.pop %v1211
        %v1213 = vsel %vm622, %v1212, 0.0
        %1214 = vadd.xlane.f32.xlu0 %v1213
        %v1215 = vpop.xlane.xlu0 %1214
        %v1216 = vrcp.pop %v1215
        %v1217 = vmul.f32 %v1212, %v1216
        %v1218 = vpack.c.bf16 %v1217, %v1217
        %1219 = vrot.lane.b32.xlu0 %v1157, 64
        %v1220 = vpop.permute.xlu0 %1219
        %v1222 = vsel %vm622, %v1218, 0
        %v1225 = vsel %vm640, %v1220, 0
        %1227 = vmatprep.subr.bf16.mxu0 0
        %1228 = vmatpush1.bf16.msra.mxu0 0
        %1229 = vmatprep.subr.bf16.mxu0 0
        %1230 = vmatpush1.bf16.msra.mxu0 0
        %1231 = vmatprep.subr.bf16.mxu0 0
        %1232 = vmatpush1.bf16.msra.mxu0 0
        %1233 = vmatprep.subr.bf16.mxu0 0
        %1234 = vmatpush1.bf16.msra.mxu0 0
        %1235 = vmatprep.subr.bf16.mxu0 0
        %1236 = vmatpush1.bf16.msra.mxu0 0
        %1237 = vmatprep.subr.bf16.mxu0 0
        %1238 = vmatpush1.bf16.msra.mxu0 0
        %1239 = vmatprep.subr.bf16.mxu0 0
        %1240 = vmatpush1.bf16.msra.mxu0 0
        %1241 = vmatprep.subr.bf16.mxu0 0
        %1242 = vmatpush1.bf16.msra.mxu0 %v1225
        %1243 = vmatprep.subr.bf16.mxu0 0
        %1244 = vmatpush2.bf16.msra.mxu0 0
        %1245 = vmatprep.subr.bf16.mxu0 0
        %1246 = vmatpush2.bf16.msra.mxu0 0
        %1247 = vmatprep.subr.bf16.mxu0 0
        %1248 = vmatpush2.bf16.msra.mxu0 0
        %1249 = vmatprep.subr.bf16.mxu0 0
        %1250 = vmatpush2.bf16.msra.mxu0 0
        %1251 = vmatprep.subr.bf16.mxu0 0
        %1252 = vmatpush2.bf16.msra.mxu0 0
        %1253 = vmatprep.subr.bf16.mxu0 0
        %1254 = vmatpush2.bf16.msra.mxu0 0
        %1255 = vmatprep.subr.bf16.mxu0 0
        %1256 = vmatpush2.bf16.msra.mxu0 0
        %1257 = vmatprep.subr.bf16.mxu0 0
        %1258 = vmatpush2.bf16.msra.mxu0 0
        %1259 = vmatprep.mubr.bf16.mxu0 0
        %1260 = vmatmul.mubr.bf16.gmra.mxu0 %v1222
        %v1261 = vpop.f32.mrf.mxu0
        %v1262 = vadd.f32 0.0, %v1261
        %v1263 = vpop.f32.mrf.mxu0
        %v1264 = vpop.f32.mrf.mxu0
        %v1265 = vpop.f32.mrf.mxu0
        %1266 = vdwg.mxu0
        %1267 = vrot.lane.b32.xlu0 %v1157, 112
        %v1268 = vpop.permute.xlu0 %1267
        %1269 = vrot.lane.b32.xlu0 %v1157, 80
        %v1270 = vpop.permute.xlu0 %1269
        %v1272 = vsel %vm575, %v1268, 0
        %v1275 = vsel %vm575, %v1270, 0
        %1277 = vmatprep.subr.bf16.mxu0 0
        %1278 = vmatpush1.bf16.xpose.msra.mxu0 0
        %1279 = vmatprep.subr.bf16.mxu0 0
        %1280 = vmatpush1.bf16.xpose.msra.mxu0 0
        %1281 = vmatprep.subr.bf16.mxu0 0
        %1282 = vmatpush1.bf16.xpose.msra.mxu0 0
        %1283 = vmatprep.subr.bf16.mxu0 0
        %1284 = vmatpush1.bf16.xpose.msra.mxu0 0
        %1285 = vmatprep.subr.bf16.mxu0 0
        %1286 = vmatpush1.bf16.xpose.msra.mxu0 0
        %1287 = vmatprep.subr.bf16.mxu0 0
        %1288 = vmatpush1.bf16.xpose.msra.mxu0 0
        %1289 = vmatprep.subr.bf16.mxu0 0
        %1290 = vmatpush1.bf16.xpose.msra.mxu0 0
        %1291 = vmatprep.subr.bf16.mxu0 0
        %1292 = vmatpush1.bf16.xpose.msra.mxu0 %v1275
        %1293 = vmatprep.subr.bf16.mxu0 0
        %1294 = vmatpush2.bf16.xpose.msra.mxu0 0
        %1295 = vmatprep.subr.bf16.mxu0 0
        %1296 = vmatpush2.bf16.xpose.msra.mxu0 0
        %1297 = vmatprep.subr.bf16.mxu0 0
        %1298 = vmatpush2.bf16.xpose.msra.mxu0 0
        %1299 = vmatprep.subr.bf16.mxu0 0
        %1300 = vmatpush2.bf16.xpose.msra.mxu0 0
        %1301 = vmatprep.subr.bf16.mxu0 0
        %1302 = vmatpush2.bf16.xpose.msra.mxu0 0
        %1303 = vmatprep.subr.bf16.mxu0 0
        %1304 = vmatpush2.bf16.xpose.msra.mxu0 0
        %1305 = vmatprep.subr.bf16.mxu0 0
        %1306 = vmatpush2.bf16.xpose.msra.mxu0 0
        %1307 = vmatprep.subr.bf16.mxu0 0
        %1308 = vmatpush2.bf16.xpose.msra.mxu0 0
        %1309 = vmatprep.mubr.bf16.mxu0 0
        %1310 = vmatmul.mubr.bf16.gmra.mxu0 %v1272
        %v1311 = vpop.f32.mrf.mxu0
        %v1312 = vadd.f32 0.0, %v1311
        %v1313 = vpop.f32.mrf.mxu0
        %v1314 = vpop.f32.mrf.mxu0
        %v1315 = vpop.f32.mrf.mxu0
        %1316 = vdwg.mxu0
        %v1317 = vsel %vm622, %v1312, -inf
        %1318 = vmax.xlane.f32.xlu0 %v1317
        %v1319 = vpop.xlane.xlu0 %1318
        %v1320 = vsub.f32 %v1312, %v1319
        %v1321 = vmul.f32 %v1320, 1.442695
        %v1322 = vpow.pop %v1321
        %v1323 = vsel %vm622, %v1322, 0.0
        %1324 = vadd.xlane.f32.xlu0 %v1323
        %v1325 = vpop.xlane.xlu0 %1324
        %v1326 = vrcp.pop %v1325
        %v1327 = vmul.f32 %v1322, %v1326
        %v1328 = vpack.c.bf16 %v1327, %v1327
        %1329 = vrot.lane.b32.xlu0 %v1157, 48
        %v1330 = vpop.permute.xlu0 %1329
        %v1332 = vsel %vm622, %v1328, 0
        %v1335 = vsel %vm640, %v1330, 0
        %1337 = vmatprep.subr.bf16.mxu0 0
        %1338 = vmatpush1.bf16.msra.mxu0 0
        %1339 = vmatprep.subr.bf16.mxu0 0
        %1340 = vmatpush1.bf16.msra.mxu0 0
        %1341 = vmatprep.subr.bf16.mxu0 0
        %1342 = vmatpush1.bf16.msra.mxu0 0
        %1343 = vmatprep.subr.bf16.mxu0 0
        %1344 = vmatpush1.bf16.msra.mxu0 0
        %1345 = vmatprep.subr.bf16.mxu0 0
        %1346 = vmatpush1.bf16.msra.mxu0 0
        %1347 = vmatprep.subr.bf16.mxu0 0
        %1348 = vmatpush1.bf16.msra.mxu0 0
        %1349 = vmatprep.subr.bf16.mxu0 0
        %1350 = vmatpush1.bf16.msra.mxu0 0
        %1351 = vmatprep.subr.bf16.mxu0 0
        %1352 = vmatpush1.bf16.msra.mxu0 %v1335
        %1353 = vmatprep.subr.bf16.mxu0 0
        %1354 = vmatpush2.bf16.msra.mxu0 0
        %1355 = vmatprep.subr.bf16.mxu0 0
        %1356 = vmatpush2.bf16.msra.mxu0 0
        %1357 = vmatprep.subr.bf16.mxu0 0
        %1358 = vmatpush2.bf16.msra.mxu0 0
        %1359 = vmatprep.subr.bf16.mxu0 0
        %1360 = vmatpush2.bf16.msra.mxu0 0
        %1361 = vmatprep.subr.bf16.mxu0 0
        %1362 = vmatpush2.bf16.msra.mxu0 0
        %1363 = vmatprep.subr.bf16.mxu0 0
        %1364 = vmatpush2.bf16.msra.mxu0 0
        %1365 = vmatprep.subr.bf16.mxu0 0
        %1366 = vmatpush2.bf16.msra.mxu0 0
        %1367 = vmatprep.subr.bf16.mxu0 0
        %1368 = vmatpush2.bf16.msra.mxu0 0
        %1369 = vmatprep.mubr.bf16.mxu0 0
        %1370 = vmatmul.mubr.bf16.gmra.mxu0 %v1332
        %v1371 = vpop.f32.mrf.mxu0
        %v1372 = vadd.f32 0.0, %v1371
        %v1373 = vpop.f32.mrf.mxu0
        %v1374 = vpop.f32.mrf.mxu0
        %v1375 = vpop.f32.mrf.mxu0
        %1376 = vdwg.mxu0
        %1378 = vrot.lane.b32.xlu0 %v1372, 16
        %v1379 = vpop.permute.xlu0 %1378
        %v1381 = vsel %vm575, %v1262, %v1379
        %v1382 = vpack.c.bf16 %v1381, %v1381
        %s1383 = scalar_lea.vmem %s5, 16
        %v1384 = vld [vmem:[%s1383] sm:$0xf]
        %v1385 = vld [vmem:[%s1383 + $0x4] sm:$0xf]
        %v1386 = vld [vmem:[%s1383 + $0x8] sm:$0xf]
        %v1387 = vld [vmem:[%s1383 + $0xc] sm:$0xf]
        %s1388 = scalar_lea.vmem %s6, 1
        %v1389 = vld [vmem:[%s1388] sm:$0x1]
        %v1391 = vlaneseq
        %v1392 = vshrl.u32 %v1391, 7
        %v1393 = vsub.s32 0, %v1392
        %v1394 = vrot.slane %v1389, %v1393
        %v1400 = vunpack.c.l.b16 %v1384
        %v1401 = vunpack.c.l.b16 %v1385
        %v1402 = vunpack.c.l.b16 %v1386
        %v1403 = vunpack.c.l.b16 %v1387
        %v1404 = vpack.c.b16 %v1401, %v1400
        %v1405 = vpack.c.b16 %v1403, %v1402
        %v1409 = vsel %vm475, %v1382, 0
        %1411 = vmatprep.subr.bf16.mxu0 0
        %1412 = vmatpush1.bf16.msra.mxu0 0
        %1413 = vmatprep.subr.bf16.mxu0 0
        %1414 = vmatpush1.bf16.msra.mxu0 0
        %1415 = vmatprep.subr.bf16.mxu0 0
        %1416 = vmatpush1.bf16.msra.mxu0 0
        %1417 = vmatprep.subr.bf16.mxu0 0
        %1418 = vmatpush1.bf16.msra.mxu0 0
        %1419 = vmatprep.subr.bf16.mxu0 0
        %1420 = vmatpush1.bf16.msra.mxu0 0
        %1421 = vmatprep.subr.bf16.mxu0 0
        %1422 = vmatpush1.bf16.msra.mxu0 0
        %1423 = vmatprep.subr.bf16.mxu0 0
        %1424 = vmatpush1.bf16.msra.mxu0 %v1405
        %1425 = vmatprep.subr.bf16.mxu0 0
        %1426 = vmatpush1.bf16.msra.mxu0 %v1404
        %1427 = vmatprep.subr.bf16.mxu0 0
        %1428 = vmatpush2.bf16.msra.mxu0 0
        %1429 = vmatprep.subr.bf16.mxu0 0
        %1430 = vmatpush2.bf16.msra.mxu0 0
        %1431 = vmatprep.subr.bf16.mxu0 0
        %1432 = vmatpush2.bf16.msra.mxu0 0
        %1433 = vmatprep.subr.bf16.mxu0 0
        %1434 = vmatpush2.bf16.msra.mxu0 0
        %1435 = vmatprep.subr.bf16.mxu0 0
        %1436 = vmatpush2.bf16.msra.mxu0 0
        %1437 = vmatprep.subr.bf16.mxu0 0
        %1438 = vmatpush2.bf16.msra.mxu0 0
        %1439 = vmatprep.subr.bf16.mxu0 0
        %1440 = vmatpush2.bf16.msra.mxu0 0
        %1441 = vmatprep.subr.bf16.mxu0 0
        %1442 = vmatpush2.bf16.msra.mxu0 0
        %1443 = vmatprep.mubr.bf16.mxu0 0
        %1444 = vmatmul.mubr.bf16.gmra.mxu0 %v1409
        %v1445 = vpop.f32.mrf.mxu0
        %v1446 = vadd.f32 %v1394, %v1445
        %v1447 = vpop.f32.mrf.mxu0
        %v1448 = vpop.f32.mrf.mxu0
        %v1449 = vpop.f32.mrf.mxu0
        %1450 = vdwg.mxu0
        %v1451 = vadd.f32 %v1056, %v1446
        %s1452 = scalar_lea.vmem %s7, 1
        %v1453 = vld [vmem:[%s1452] sm:$0x1]
        %s1454 = scalar_lea.vmem %s8, 1
        %v1455 = vld [vmem:[%s1454] sm:$0x1]
        %v1456 = vsel %vm475, %v1451, 0.0
        %1457 = vadd.xlane.f32.xlu0 %v1456
        %v1458 = vpop.xlane.xlu0 %1457
        %v1459 = vmul.f32 %v1458, %v479
        %v1460 = vsub.f32 %v1451, %v1459
        %v1461 = vmul.f32 %v1460, %v1460
        %v1462 = vsel %vm475, %v1461, 0.0
        %1463 = vadd.xlane.f32.xlu0 %v1462
        %v1464 = vpop.xlane.xlu0 %1463
        %v1465 = vmul.f32 %v1464, %v479
        %v1466 = vadd.f32 %v1465, 1e-05
        %v1467 = vrsqrt.pop %v1466
        %v1468 = vmul.f32 %v1460, %v1467
        %v1470 = vlaneseq
        %v1471 = vshrl.u32 %v1470, 7
        %v1472 = vsub.s32 0, %v1471
        %v1473 = vrot.slane %v1453, %v1472
        %v1475 = vmul.f32 %v1468, %v1473
        %v1477 = vlaneseq
        %v1478 = vshrl.u32 %v1477, 7
        %v1479 = vsub.s32 0, %v1478
        %v1480 = vrot.slane %v1455, %v1479
        %v1482 = vadd.f32 %v1475, %v1480
        %v1483 = vpack.c.bf16 %v1482, %v1482
        %s1484 = scalar_lea.vmem %s9, 16
        %v1485 = vld [vmem:[%s1484] sm:$0xf]
        %v1486 = vld [vmem:[%s1484 + $0x4] sm:$0xf]
        %v1487 = vld [vmem:[%s1484 + $0x8] sm:$0xf]
        %v1488 = vld [vmem:[%s1484 + $0xc] sm:$0xf]
        %s1489 = scalar_lea.vmem %s10, 1
        %v1490 = vld [vmem:[%s1489] sm:$0x1]
        %v1492 = vlaneseq
        %v1493 = vshrl.u32 %v1492, 7
        %v1494 = vsub.s32 0, %v1493
        %v1495 = vrot.slane %v1490, %v1494
        %v1501 = vunpack.c.l.b16 %v1485
        %v1502 = vunpack.c.l.b16 %v1486
        %v1503 = vunpack.c.l.b16 %v1487
        %v1504 = vunpack.c.l.b16 %v1488
        %v1505 = vpack.c.b16 %v1502, %v1501
        %v1506 = vpack.c.b16 %v1504, %v1503
        %v1510 = vsel %vm475, %v1483, 0
        %1512 = vmatprep.subr.bf16.mxu0 0
        %1513 = vmatpush1.bf16.msra.mxu0 0
        %1514 = vmatprep.subr.bf16.mxu0 0
        %1515 = vmatpush1.bf16.msra.mxu0 0
        %1516 = vmatprep.subr.bf16.mxu0 0
        %1517 = vmatpush1.bf16.msra.mxu0 0
        %1518 = vmatprep.subr.bf16.mxu0 0
        %1519 = vmatpush1.bf16.msra.mxu0 0
        %1520 = vmatprep.subr.bf16.mxu0 0
        %1521 = vmatpush1.bf16.msra.mxu0 0
        %1522 = vmatprep.subr.bf16.mxu0 0
        %1523 = vmatpush1.bf16.msra.mxu0 0
        %1524 = vmatprep.subr.bf16.mxu0 0
        %1525 = vmatpush1.bf16.msra.mxu0 %v1506
        %1526 = vmatprep.subr.bf16.mxu0 0
        %1527 = vmatpush1.bf16.msra.mxu0 %v1505
        %1528 = vmatprep.subr.bf16.mxu0 0
        %1529 = vmatpush2.bf16.msra.mxu0 0
        %1530 = vmatprep.subr.bf16.mxu0 0
        %1531 = vmatpush2.bf16.msra.mxu0 0
        %1532 = vmatprep.subr.bf16.mxu0 0
        %1533 = vmatpush2.bf16.msra.mxu0 0
        %1534 = vmatprep.subr.bf16.mxu0 0
        %1535 = vmatpush2.bf16.msra.mxu0 0
        %1536 = vmatprep.subr.bf16.mxu0 0
        %1537 = vmatpush2.bf16.msra.mxu0 0
        %1538 = vmatprep.subr.bf16.mxu0 0
        %1539 = vmatpush2.bf16.msra.mxu0 0
        %1540 = vmatprep.subr.bf16.mxu0 0
        %1541 = vmatpush2.bf16.msra.mxu0 0
        %1542 = vmatprep.subr.bf16.mxu0 0
        %1543 = vmatpush2.bf16.msra.mxu0 0
        %1544 = vmatprep.mubr.bf16.mxu0 0
        %1545 = vmatmul.mubr.bf16.gmra.mxu0 %v1510
        %v1546 = vpop.f32.mrf.mxu0
        %v1547 = vadd.f32 %v1495, %v1546
        %v1548 = vpop.f32.mrf.mxu0
        %v1549 = vpop.f32.mrf.mxu0
        %v1550 = vpop.f32.mrf.mxu0
        %1551 = vdwg.mxu0
        %v1552 = vmul.f32 %v1547, %v1547
        %v1553 = vmul.f32 %v1547, %v1552
        %v1554 = vmul.f32 %v1553, 0.044715
        %v1555 = vadd.f32 %v1547, %v1554
        %v1556 = vmul.f32 %v1555, 0.7978846
        %v1557 = vtanh.pop %v1556
        %v1558 = vadd.f32 %v1557, 1.0
        %v1559 = vmul.f32 %v1558, 0.5
        %v1560 = vmul.f32 %v1547, %v1559
        %v1561 = vpack.c.bf16 %v1560, %v1560
        %s1562 = scalar_lea.vmem %s11, 32
        %v1563 = vld [vmem:[%s1562] sm:$0xf]
        %v1564 = vld [vmem:[%s1562 + $0x4] sm:$0xf]
        %v1565 = vld [vmem:[%s1562 + $0x8] sm:$0xf]
        %v1566 = vld [vmem:[%s1562 + $0xc] sm:$0xf]
        %v1567 = vld [vmem:[%s1562 + $0x10] sm:$0xf]
        %v1568 = vld [vmem:[%s1562 + $0x14] sm:$0xf]
        %v1569 = vld [vmem:[%s1562 + $0x18] sm:$0xf]
        %v1570 = vld [vmem:[%s1562 + $0x1c] sm:$0xf]
        %s1571 = scalar_lea.vmem %s12, 1
        %v1572 = vld [vmem:[%s1571] sm:$0x1]
        %v1574 = vlaneseq
        %v1575 = vshrl.u32 %v1574, 7
        %v1576 = vsub.s32 0, %v1575
        %v1577 = vrot.slane %v1572, %v1576
        %v1587 = vunpack.c.l.b16 %v1563
        %v1588 = vunpack.c.l.b16 %v1564
        %v1589 = vunpack.c.l.b16 %v1565
        %v1590 = vunpack.c.l.b16 %v1566
        %v1591 = vunpack.c.l.b16 %v1567
        %v1592 = vunpack.c.l.b16 %v1568
        %v1593 = vunpack.c.l.b16 %v1569
        %v1594 = vunpack.c.l.b16 %v1570
        %v1595 = vpack.c.b16 %v1588, %v1587
        %v1596 = vpack.c.b16 %v1590, %v1589
        %v1597 = vpack.c.b16 %v1592, %v1591
        %v1598 = vpack.c.b16 %v1594, %v1593
        %v1604 = vsel %vm1012, %v1561, 0
        %1606 = vmatprep.subr.bf16.mxu0 0
        %1607 = vmatpush1.bf16.msra.mxu0 0
        %1608 = vmatprep.subr.bf16.mxu0 0
        %1609 = vmatpush1.bf16.msra.mxu0 0
        %1610 = vmatprep.subr.bf16.mxu0 0
        %1611 = vmatpush1.bf16.msra.mxu0 0
        %1612 = vmatprep.subr.bf16.mxu0 0
        %1613 = vmatpush1.bf16.msra.mxu0 0
        %1614 = vmatprep.subr.bf16.mxu0 0
        %1615 = vmatpush1.bf16.msra.mxu0 %v1598
        %1616 = vmatprep.subr.bf16.mxu0 0
        %1617 = vmatpush1.bf16.msra.mxu0 %v1597
        %1618 = vmatprep.subr.bf16.mxu0 0
        %1619 = vmatpush1.bf16.msra.mxu0 %v1596
        %1620 = vmatprep.subr.bf16.mxu0 0
        %1621 = vmatpush1.bf16.msra.mxu0 %v1595
        %1622 = vmatprep.subr.bf16.mxu0 0
        %1623 = vmatpush2.bf16.msra.mxu0 0
        %1624 = vmatprep.subr.bf16.mxu0 0
        %1625 = vmatpush2.bf16.msra.mxu0 0
        %1626 = vmatprep.subr.bf16.mxu0 0
        %1627 = vmatpush2.bf16.msra.mxu0 0
        %1628 = vmatprep.subr.bf16.mxu0 0
        %1629 = vmatpush2.bf16.msra.mxu0 0
        %1630 = vmatprep.subr.bf16.mxu0 0
        %1631 = vmatpush2.bf16.msra.mxu0 0
        %1632 = vmatprep.subr.bf16.mxu0 0
        %1633 = vmatpush2.bf16.msra.mxu0 0
        %1634 = vmatprep.subr.bf16.mxu0 0
        %1635 = vmatpush2.bf16.msra.mxu0 0
        %1636 = vmatprep.subr.bf16.mxu0 0
        %1637 = vmatpush2.bf16.msra.mxu0 0
        %1638 = vmatprep.mubr.bf16.mxu0 0
        %1639 = vmatmul.mubr.bf16.gmra.mxu0 %v1604
        %v1640 = vpop.f32.mrf.mxu0
        %v1641 = vadd.f32 %v1577, %v1640
        %v1642 = vpop.f32.mrf.mxu0
        %v1643 = vpop.f32.mrf.mxu0
        %v1644 = vpop.f32.mrf.mxu0
        %1645 = vdwg.mxu0
        %v1646 = vadd.f32 %v1451, %v1641
        %1647 = vst.msk [vmem:[%s470] sm:$0xff] %vm475, %v1646
        %s1648 = sand.u32 %s317, 1
        %s1649 = scalar_lea.sflag [#allocation4], %s1648
        %s1650 = sand.u32 %s317, 1
        %s1651 = smul.addr %s1650, 8
        %s1652 = scalar_lea.vmem [#allocation7], %s1651
        // Predicated region
        $region81: #{tpu_custom_call.1} parent=71 // pred_check
          %p1653 = pneg %p327
        $region82: #{tpu_custom_call.1} parent=71 // pred_check_branch
          %1655 = sbr.rel (%p1653) target = $region84
        $region83: #{tpu_custom_call.1} parent=71 // pred_region
          %s1657 = ssub.s32 128, 128
          %1658 = vsyncadd %s1649, %s1657
          %s1659 = smul.addr %s31, 128
          %s1660 = scalar_lea.hbm %s13, %s1659
          %s1662 = sshll.u32 %s1652, 4
          %s1663 = int_to_ptr.vmem [resolvable:$true] %s1662
          %1665 = dma.vmem_to_hbm [thread:$0]  %s1663, 128, %s1660, %s1649
        $region84: #{tpu_custom_call.1} parent=71 // pred_fallthru
          _
      $region72: #{tpu_custom_call.1} parent=5 // pred_fallthru
        _
      %p1666 = scmp.le.s32.totalorder 2, %s26
      // Predicated region
      $region85: #{tpu_custom_call.1} parent=5 // pred_check
        %p1667 = pneg %p1666
      $region86: #{tpu_custom_call.1} parent=5 // pred_check_branch
        %1669 = sbr.rel (%p1667) target = $region88
      $region87: #{tpu_custom_call.1} parent=5 // pred_region
        %s1670 = ssub.s32 %s26, 2
        // Predicated region
        $region89: #{tpu_custom_call.1} parent=87 // pred_check
          %p1671 = pneg %p333
        $region90: #{tpu_custom_call.1} parent=87 // pred_check_branch
          %1673 = sbr.rel (%p1671) target = $region92
        $region91: #{tpu_custom_call.1} parent=87 // pred_region
          %s1674 = sand.u32 %s318, 1
          %s1675 = scalar_lea.sflag [#allocation4], %s1674
          %s1676 = sand.u32 %s318, 1
          %s1677 = smul.addr %s1676, 8
          %s1678 = scalar_lea.vmem [#allocation7], %s1677
          %1679 = dma.done %s1675, 128
        $region92: #{tpu_custom_call.1} parent=87 // pred_fallthru
          _
      $region88: #{tpu_custom_call.1} parent=5 // pred_fallthru
        _
    $region6: #{tpu_custom_call.1} parent=1 // loop_footer
      %s30 = sadd.s32 1, %s26
    $region7: #{tpu_custom_call.1} parent=1 // loop_footer_branch
      %25 = sbr.rel target = $region3
    $region8: #{tpu_custom_call.1} parent=1 // loop_exit
      _
    %1680 = vsyncpa [#allocation3], 1
    %s1681 = scalar_lea.sflag [#allocation3], 1
    %1682 = vsyncpa %s1681, 1
    %1683 = vsyncpa [#allocation6], 1
    %1684 = vsyncpa [#allocation4], 1
    %s1685 = scalar_lea.sflag [#allocation4], 1
    %1686 = vsyncpa %s1685, 1

</llo_original>
